<compile_context>
chip_gen: v7x
topology: tpu7x:2x2x1
jax: 0.10.0
libtpu: 0.0.40
codegen_flags: <defaults>
</compile_context>

<pallas_src>
import functools

import jax
import jax.numpy as jnp
from jax.experimental import pallas as pl
from jax.experimental.pallas import tpu as pltpu


def highway_kernel(x_ref, wl_ref, bl_ref, wg_ref, bg_ref, o_ref, *, num_layers):
    # x_ref: (tile_m, Dp)          input rows (original dtype)
    # wl_ref/wg_ref: (L, Dp, Dp)   bf16 weights, PyTorch (out, in) order
    # bl_ref/bg_ref: (L, 1, Dp)    f32 biases
    # o_ref: (tile_m, Dp)
    dn = (((1,), (1,)), ((), ()))            # contract x dim1 with W dim1 -> x @ W^T
    x = x_ref[...].astype(jnp.float32)
    for l in range(num_layers):              # static unroll; num_layers is small
        xb = x.astype(jnp.bfloat16)          # bf16 MXU operands, f32 accumulation
        lin = jax.lax.dot_general(xb, wl_ref[l], dn,
                                  preferred_element_type=jnp.float32)
        lin = jnp.maximum(lin + bl_ref[l], 0.0)            # ReLU
        g = jax.lax.dot_general(xb, wg_ref[l], dn,
                                preferred_element_type=jnp.float32)
        g = jax.nn.sigmoid(g + bg_ref[l])                  # gate
        x = x + g * (lin - x)                # == g*lin + (1-g)*x
    o_ref[...] = x.astype(o_ref.dtype)


def _round_up(n, m):
    return ((n + m - 1) // m) * m


def _choose_tile_m(M, desired=512):
    # Big row tile to amortize per-step pipeline overhead and fill MXU rows, but
    # keep at least 2 grid steps when M allows it (lets v7x use both TCs).
    if M <= 8:
        return 8
    half = _round_up((M + 1) // 2, 8)
    return max(8, min(desired, half))


def _fit_vmem(tile_m, Dp, L, x_itemsize, budget_bytes=24 * 1024 * 1024):
    # Conservative estimate (assume everything double-buffered) vs the default
    # scoped-VMEM limit (32 MiB on v6e/v7x); shrink the row tile if needed.
    # TODO(synk): for very large L*Dp^2 (weights alone over budget) split the
    # layer loop onto an 'arbitrary' grid axis so only one layer is resident.
    def est(tm):
        w = 2 * (2 * L * Dp * Dp * 2)                 # gate+linear weights, bf16
        b = 2 * (2 * L * Dp * 4)                      # biases, f32
        xo = 2 * (2 * tm * Dp * max(x_itemsize, 4))   # x-in + out tiles
        acc = 4 * tm * Dp * 4                         # f32 temporaries (rough)
        return w + b + xo + acc
    while tile_m > 8 and est(tile_m) > budget_bytes:
        tile_m = max(8, (tile_m // 2) // 8 * 8)
    return tile_m


def _build_call(L, Dp, Mp, tile_m, out_dtype, single_buffer_weights):
    const_kwargs = {}
    if single_buffer_weights:
        # grid-invariant operands: no need for a second DMA buffer
        const_kwargs["pipeline_mode"] = pl.Buffered(1)
    grid = (Mp // tile_m,)
    return pl.pallas_call(
        functools.partial(highway_kernel, num_layers=L),
        out_shape=jax.ShapeDtypeStruct((Mp, Dp), out_dtype),
        grid_spec=pltpu.PrefetchScalarGridSpec(
            num_scalar_prefetch=0,
            grid=grid,
            in_specs=[
                pl.BlockSpec((tile_m, Dp), lambda i: (i, 0)),               # x rows
                pl.BlockSpec((L, Dp, Dp), lambda i: (0, 0, 0), **const_kwargs),  # linear W
                pl.BlockSpec((L, 1, Dp), lambda i: (0, 0, 0), **const_kwargs),   # linear b
                pl.BlockSpec((L, Dp, Dp), lambda i: (0, 0, 0), **const_kwargs),  # gate W
                pl.BlockSpec((L, 1, Dp), lambda i: (0, 0, 0), **const_kwargs),   # gate b
            ],
            out_specs=pl.BlockSpec((tile_m, Dp), lambda i: (i, 0)),
        ),
        compiler_params=pltpu.CompilerParams(
            dimension_semantics=("parallel",)),
    )


def highway(x, wl, bl, wg, bg, *, tile_m=None):
    """x: (..., D); wl/wg: (L, D, D) in PyTorch (out, in) order; bl/bg: (L, D)."""
    D = x.shape[-1]
    lead = x.shape[:-1]
    M = 1
    for s in lead:
        M *= s
    L = wl.shape[0]

    # lane-pad hidden dim to a multiple of 128
    Dp = _round_up(max(D, 128), 128)

    if tile_m is None:
        tile_m = _choose_tile_m(M)
    tile_m = _round_up(max(tile_m, 8), 8)
    tile_m = _fit_vmem(tile_m, Dp, L, jnp.dtype(x.dtype).itemsize)

    Mp = _round_up(max(M, tile_m), tile_m)

    x2 = jnp.pad(x.reshape(M, D), ((0, Mp - M), (0, Dp - D)))
    # NOTE: in a real model these padded / bf16-cast weights should be prepared
    # once outside the hot path and reused across calls.
    wl_p = jnp.pad(wl, ((0, 0), (0, Dp - D), (0, Dp - D))).astype(jnp.bfloat16)
    wg_p = jnp.pad(wg, ((0, 0), (0, Dp - D), (0, Dp - D))).astype(jnp.bfloat16)
    bl_p = jnp.pad(bl, ((0, 0), (0, Dp - D))).astype(jnp.float32).reshape(L, 1, Dp)
    bg_p = jnp.pad(bg, ((0, 0), (0, Dp - D))).astype(jnp.float32).reshape(L, 1, Dp)

    try:
        call = _build_call(L, Dp, Mp, tile_m, x.dtype, single_buffer_weights=True)
        out = jax.block_until_ready(call(x2, wl_p, bl_p, wg_p, bg_p))
    except Exception:
        # fallback: default (double) buffering for the grid-invariant operands
        call = _build_call(L, Dp, Mp, tile_m, x.dtype, single_buffer_weights=False)
        out = jax.block_until_ready(call(x2, wl_p, bl_p, wg_p, bg_p))

    return out[:M, :D].reshape(*lead, D)


def highway_ref(x, wl, bl, wg, bg):
    """Pure-JAX f32 reference matching the PyTorch forward."""
    L = wl.shape[0]
    for l in range(L):
        lin = jnp.maximum(x @ wl[l].T + bl[l], 0.0)
        g = jax.nn.sigmoid(x @ wg[l].T + bg[l])
        x = g * lin + (1.0 - g) * x
    return x


if __name__ == "__main__":
    # Synthetic config: hidden_size=32, num_layers=2, batch=2, seq=8.
    hidden = 32
    num_layers = 2
    batch, seq = 2, 8

    key = jax.random.PRNGKey(0)
    kx, kwl, kbl, kwg, kbg = jax.random.split(key, 5)

    x = jax.random.normal(kx, (batch, seq, hidden), dtype=jnp.float32)
    # PyTorch Linear shapes: weight (out, in), bias (out,)
    wl = 0.1 * jax.random.normal(kwl, (num_layers, hidden, hidden), dtype=jnp.float32)
    bl = 0.1 * jax.random.normal(kbl, (num_layers, hidden), dtype=jnp.float32)
    wg = 0.1 * jax.random.normal(kwg, (num_layers, hidden, hidden), dtype=jnp.float32)
    bg = 0.1 * jax.random.normal(kbg, (num_layers, hidden), dtype=jnp.float32)

    out = highway(x, wl, bl, wg, bg)
    out = jax.block_until_ready(out)

    ref = highway_ref(x, wl, bl, wg, bg)
    assert out.shape == x.shape and out.dtype == x.dtype
    # bf16 MXU operands -> compare against the f32 reference at bf16-level tol
    assert jnp.allclose(out, ref, atol=2e-2, rtol=2e-2), float(
        jnp.max(jnp.abs(out - ref)))
    print("KERNEL_OK")
</pallas_src>

<mosaic_0001>
module attributes {stable_mosaic.version = 11 : i64} {
  func.func @highway_kernel(%arg0: i32, %arg1: memref<8x128xf32, #tpu.memory_space<vmem>>, %arg2: memref<2x128x128xbf16, #tpu.memory_space<vmem>>, %arg3: memref<2x1x128xf32, #tpu.memory_space<vmem>>, %arg4: memref<2x128x128xbf16, #tpu.memory_space<vmem>>, %arg5: memref<2x1x128xf32, #tpu.memory_space<vmem>>, %arg6: memref<8x128xf32, #tpu.memory_space<vmem>>) attributes {dimension_semantics = [#tpu.dimension_semantics<parallel>], iteration_bounds = array<i64: 2>, scalar_prefetch = 0 : i64, scratch_operands = 0 : i64, tpu.core_type = #tpu.core_type<tc>, window_params = [{transform_indices = @transform_0, window_bounds = array<i64: 8, 128>}, {pipeline_mode = #tpu.pipeline_mode<synchronous>, transform_indices = @transform_1, window_bounds = array<i64: 2, 128, 128>}, {pipeline_mode = #tpu.pipeline_mode<synchronous>, transform_indices = @transform_2, window_bounds = array<i64: 2, 1, 128>}, {pipeline_mode = #tpu.pipeline_mode<synchronous>, transform_indices = @transform_3, window_bounds = array<i64: 2, 128, 128>}, {pipeline_mode = #tpu.pipeline_mode<synchronous>, transform_indices = @transform_4, window_bounds = array<i64: 2, 1, 128>}, {transform_indices = @transform_5, window_bounds = array<i64: 8, 128>}]} {
    %c0 = arith.constant 0 : index
    %c0_0 = arith.constant 0 : index
    %0 = vector.load %arg1[%c0, %c0_0] : memref<8x128xf32, #tpu.memory_space<vmem>>, vector<8x128xf32>
    %1 = arith.truncf %0 : vector<8x128xf32> to vector<8x128xbf16>
    %c0_1 = arith.constant 0 : index
    %c0_2 = arith.constant 0 : index
    %c0_3 = arith.constant 0 : index
    %2 = vector.load %arg2[%c0_1, %c0_2, %c0_3] : memref<2x128x128xbf16, #tpu.memory_space<vmem>>, vector<1x128x128xbf16>
    %3 = vector.shape_cast %2 : vector<1x128x128xbf16> to vector<128x128xbf16>
    %cst = arith.constant dense<0.000000e+00> : vector<8x128xf32>
    %4 = tpu.matmul %1, %3, %cst {dimension_numbers = #tpu.dot_dimension_numbers<[1], [1], [0], [0], [0, 0, 1, 0], [], []>} : vector<8x128xbf16>, vector<128x128xbf16>, vector<8x128xf32> -> vector<8x128xf32>
    %c0_4 = arith.constant 0 : index
    %c0_5 = arith.constant 0 : index
    %c0_6 = arith.constant 0 : index
    %5 = vector.load %arg3[%c0_4, %c0_5, %c0_6] : memref<2x1x128xf32, #tpu.memory_space<vmem>>, vector<1x1x128xf32>
    %6 = vector.shape_cast %5 : vector<1x1x128xf32> to vector<1x128xf32>
    %7 = vector.broadcast %6 : vector<1x128xf32> to vector<8x128xf32>
    %8 = arith.addf %4, %7 : vector<8x128xf32>
    %cst_7 = arith.constant 0.000000e+00 : f32
    %9 = vector.broadcast %cst_7 : f32 to vector<8x128xf32>
    %10 = arith.maximumf %8, %9 : vector<8x128xf32>
    %c0_8 = arith.constant 0 : index
    %c0_9 = arith.constant 0 : index
    %c0_10 = arith.constant 0 : index
    %11 = vector.load %arg4[%c0_8, %c0_9, %c0_10] : memref<2x128x128xbf16, #tpu.memory_space<vmem>>, vector<1x128x128xbf16>
    %12 = vector.shape_cast %11 : vector<1x128x128xbf16> to vector<128x128xbf16>
    %cst_11 = arith.constant dense<0.000000e+00> : vector<8x128xf32>
    %13 = tpu.matmul %1, %12, %cst_11 {dimension_numbers = #tpu.dot_dimension_numbers<[1], [1], [0], [0], [0, 0, 1, 0], [], []>} : vector<8x128xbf16>, vector<128x128xbf16>, vector<8x128xf32> -> vector<8x128xf32>
    %c0_12 = arith.constant 0 : index
    %c0_13 = arith.constant 0 : index
    %c0_14 = arith.constant 0 : index
    %14 = vector.load %arg5[%c0_12, %c0_13, %c0_14] : memref<2x1x128xf32, #tpu.memory_space<vmem>>, vector<1x1x128xf32>
    %15 = vector.shape_cast %14 : vector<1x1x128xf32> to vector<1x128xf32>
    %16 = vector.broadcast %15 : vector<1x128xf32> to vector<8x128xf32>
    %17 = arith.addf %13, %16 : vector<8x128xf32>
    %18 = arith.negf %17 : vector<8x128xf32>
    %19 = math.exp %18 : vector<8x128xf32>
    %cst_15 = arith.constant 1.000000e+00 : f32
    %20 = vector.broadcast %cst_15 : f32 to vector<8x128xf32>
    %21 = arith.addf %20, %19 : vector<8x128xf32>
    %22 = arith.divf %20, %21 : vector<8x128xf32>
    %23 = arith.subf %10, %0 : vector<8x128xf32>
    %24 = arith.mulf %22, %23 : vector<8x128xf32>
    %25 = arith.addf %0, %24 : vector<8x128xf32>
    %26 = arith.truncf %25 : vector<8x128xf32> to vector<8x128xbf16>
    %c1 = arith.constant 1 : index
    %c0_16 = arith.constant 0 : index
    %c0_17 = arith.constant 0 : index
    %27 = vector.load %arg2[%c1, %c0_16, %c0_17] : memref<2x128x128xbf16, #tpu.memory_space<vmem>>, vector<1x128x128xbf16>
    %28 = vector.shape_cast %27 : vector<1x128x128xbf16> to vector<128x128xbf16>
    %cst_18 = arith.constant dense<0.000000e+00> : vector<8x128xf32>
    %29 = tpu.matmul %26, %28, %cst_18 {dimension_numbers = #tpu.dot_dimension_numbers<[1], [1], [0], [0], [0, 0, 1, 0], [], []>} : vector<8x128xbf16>, vector<128x128xbf16>, vector<8x128xf32> -> vector<8x128xf32>
    %c1_19 = arith.constant 1 : index
    %c0_20 = arith.constant 0 : index
    %c0_21 = arith.constant 0 : index
    %30 = vector.load %arg3[%c1_19, %c0_20, %c0_21] : memref<2x1x128xf32, #tpu.memory_space<vmem>>, vector<1x1x128xf32>
    %31 = vector.shape_cast %30 : vector<1x1x128xf32> to vector<1x128xf32>
    %32 = vector.broadcast %31 : vector<1x128xf32> to vector<8x128xf32>
    %33 = arith.addf %29, %32 : vector<8x128xf32>
    %cst_22 = arith.constant 0.000000e+00 : f32
    %34 = vector.broadcast %cst_22 : f32 to vector<8x128xf32>
    %35 = arith.maximumf %33, %34 : vector<8x128xf32>
    %c1_23 = arith.constant 1 : index
    %c0_24 = arith.constant 0 : index
    %c0_25 = arith.constant 0 : index
    %36 = vector.load %arg4[%c1_23, %c0_24, %c0_25] : memref<2x128x128xbf16, #tpu.memory_space<vmem>>, vector<1x128x128xbf16>
    %37 = vector.shape_cast %36 : vector<1x128x128xbf16> to vector<128x128xbf16>
    %cst_26 = arith.constant dense<0.000000e+00> : vector<8x128xf32>
    %38 = tpu.matmul %26, %37, %cst_26 {dimension_numbers = #tpu.dot_dimension_numbers<[1], [1], [0], [0], [0, 0, 1, 0], [], []>} : vector<8x128xbf16>, vector<128x128xbf16>, vector<8x128xf32> -> vector<8x128xf32>
    %c1_27 = arith.constant 1 : index
    %c0_28 = arith.constant 0 : index
    %c0_29 = arith.constant 0 : index
    %39 = vector.load %arg5[%c1_27, %c0_28, %c0_29] : memref<2x1x128xf32, #tpu.memory_space<vmem>>, vector<1x1x128xf32>
    %40 = vector.shape_cast %39 : vector<1x1x128xf32> to vector<1x128xf32>
    %41 = vector.broadcast %40 : vector<1x128xf32> to vector<8x128xf32>
    %42 = arith.addf %38, %41 : vector<8x128xf32>
    %43 = arith.negf %42 : vector<8x128xf32>
    %44 = math.exp %43 : vector<8x128xf32>
    %cst_30 = arith.constant 1.000000e+00 : f32
    %45 = vector.broadcast %cst_30 : f32 to vector<8x128xf32>
    %46 = arith.addf %45, %44 : vector<8x128xf32>
    %47 = arith.divf %45, %46 : vector<8x128xf32>
    %48 = arith.subf %35, %25 : vector<8x128xf32>
    %49 = arith.mulf %47, %48 : vector<8x128xf32>
    %50 = arith.addf %25, %49 : vector<8x128xf32>
    %c0_31 = arith.constant 0 : index
    %c0_32 = arith.constant 0 : index
    %51 = vector.load %arg6[%c0_31, %c0_32] : memref<8x128xf32, #tpu.memory_space<vmem>>, vector<8x128xf32>
    tpu.vector_store %arg6[%c0_31, %c0_32], %50 {strides = array<i32>} : memref<8x128xf32, #tpu.memory_space<vmem>>, vector<8x128xf32>,
    return
  }
  func.func @transform_0(%arg0: i32) -> (i32, i32) {
    %c0_i32 = arith.constant 0 : i32
    %c0_i32_0 = arith.constant 0 : i32
    return %arg0, %c0_i32 : i32, i32
  }
  func.func @transform_1(%arg0: i32) -> (i32, i32, i32) {
    %c0_i32 = arith.constant 0 : i32
    %c0_i32_0 = arith.constant 0 : i32
    %c0_i32_1 = arith.constant 0 : i32
    %c0_i32_2 = arith.constant 0 : i32
    return %c0_i32, %c0_i32_0, %c0_i32_1 : i32, i32, i32
  }
  func.func @transform_2(%arg0: i32) -> (i32, i32, i32) {
    %c0_i32 = arith.constant 0 : i32
    %c0_i32_0 = arith.constant 0 : i32
    %c0_i32_1 = arith.constant 0 : i32
    %c0_i32_2 = arith.constant 0 : i32
    return %c0_i32, %c0_i32_0, %c0_i32_1 : i32, i32, i32
  }
  func.func @transform_3(%arg0: i32) -> (i32, i32, i32) {
    %c0_i32 = arith.constant 0 : i32
    %c0_i32_0 = arith.constant 0 : i32
    %c0_i32_1 = arith.constant 0 : i32
    %c0_i32_2 = arith.constant 0 : i32
    return %c0_i32, %c0_i32_0, %c0_i32_1 : i32, i32, i32
  }
  func.func @transform_4(%arg0: i32) -> (i32, i32, i32) {
    %c0_i32 = arith.constant 0 : i32
    %c0_i32_0 = arith.constant 0 : i32
    %c0_i32_1 = arith.constant 0 : i32
    %c0_i32_2 = arith.constant 0 : i32
    return %c0_i32, %c0_i32_0, %c0_i32_1 : i32, i32, i32
  }
  func.func @transform_5(%arg0: i32) -> (i32, i32) {
    %c0_i32 = arith.constant 0 : i32
    %c0_i32_0 = arith.constant 0 : i32
    return %arg0, %c0_i32 : i32, i32
  }
}

module attributes {stable_mosaic.version = 11 : i64} {
  func.func @highway_kernel(%arg0: i32, %arg1: memref<8x128xf32, #tpu.memory_space<vmem>>, %arg2: memref<2x128x128xbf16, #tpu.memory_space<vmem>>, %arg3: memref<2x1x128xf32, #tpu.memory_space<vmem>>, %arg4: memref<2x128x128xbf16, #tpu.memory_space<vmem>>, %arg5: memref<2x1x128xf32, #tpu.memory_space<vmem>>, %arg6: memref<8x128xf32, #tpu.memory_space<vmem>>) attributes {dimension_semantics = [#tpu.dimension_semantics<parallel>], iteration_bounds = array<i64: 2>, scalar_prefetch = 0 : i64, scratch_operands = 0 : i64, tpu.core_type = #tpu.core_type<tc>, window_params = [{transform_indices = @transform_0, window_bounds = array<i64: 8, 128>}, {pipeline_mode = #tpu.pipeline_mode<synchronous>, transform_indices = @transform_1, window_bounds = array<i64: 2, 128, 128>}, {pipeline_mode = #tpu.pipeline_mode<synchronous>, transform_indices = @transform_2, window_bounds = array<i64: 2, 1, 128>}, {pipeline_mode = #tpu.pipeline_mode<synchronous>, transform_indices = @transform_3, window_bounds = array<i64: 2, 128, 128>}, {pipeline_mode = #tpu.pipeline_mode<synchronous>, transform_indices = @transform_4, window_bounds = array<i64: 2, 1, 128>}, {transform_indices = @transform_5, window_bounds = array<i64: 8, 128>}]} {
    %c0 = arith.constant 0 : index
    %c0_0 = arith.constant 0 : index
    %0 = vector.load %arg1[%c0, %c0_0] : memref<8x128xf32, #tpu.memory_space<vmem>>, vector<8x128xf32>
    %1 = arith.truncf %0 : vector<8x128xf32> to vector<8x128xbf16>
    %c0_1 = arith.constant 0 : index
    %c0_2 = arith.constant 0 : index
    %c0_3 = arith.constant 0 : index
    %2 = vector.load %arg2[%c0_1, %c0_2, %c0_3] : memref<2x128x128xbf16, #tpu.memory_space<vmem>>, vector<1x128x128xbf16>
    %3 = vector.shape_cast %2 : vector<1x128x128xbf16> to vector<128x128xbf16>
    %cst = arith.constant dense<0.000000e+00> : vector<8x128xf32>
    %4 = tpu.matmul %1, %3, %cst {dimension_numbers = #tpu.dot_dimension_numbers<[1], [1], [0], [0], [0, 0, 1, 0], [], []>} : vector<8x128xbf16>, vector<128x128xbf16>, vector<8x128xf32> -> vector<8x128xf32>
    %c0_4 = arith.constant 0 : index
    %c0_5 = arith.constant 0 : index
    %c0_6 = arith.constant 0 : index
    %5 = vector.load %arg3[%c0_4, %c0_5, %c0_6] : memref<2x1x128xf32, #tpu.memory_space<vmem>>, vector<1x1x128xf32>
    %6 = vector.shape_cast %5 : vector<1x1x128xf32> to vector<1x128xf32>
    %7 = vector.broadcast %6 : vector<1x128xf32> to vector<8x128xf32>
    %8 = arith.addf %4, %7 : vector<8x128xf32>
    %cst_7 = arith.constant 0.000000e+00 : f32
    %9 = vector.broadcast %cst_7 : f32 to vector<8x128xf32>
    %10 = arith.maximumf %8, %9 : vector<8x128xf32>
    %c0_8 = arith.constant 0 : index
    %c0_9 = arith.constant 0 : index
    %c0_10 = arith.constant 0 : index
    %11 = vector.load %arg4[%c0_8, %c0_9, %c0_10] : memref<2x128x128xbf16, #tpu.memory_space<vmem>>, vector<1x128x128xbf16>
    %12 = vector.shape_cast %11 : vector<1x128x128xbf16> to vector<128x128xbf16>
    %cst_11 = arith.constant dense<0.000000e+00> : vector<8x128xf32>
    %13 = tpu.matmul %1, %12, %cst_11 {dimension_numbers = #tpu.dot_dimension_numbers<[1], [1], [0], [0], [0, 0, 1, 0], [], []>} : vector<8x128xbf16>, vector<128x128xbf16>, vector<8x128xf32> -> vector<8x128xf32>
    %c0_12 = arith.constant 0 : index
    %c0_13 = arith.constant 0 : index
    %c0_14 = arith.constant 0 : index
    %14 = vector.load %arg5[%c0_12, %c0_13, %c0_14] : memref<2x1x128xf32, #tpu.memory_space<vmem>>, vector<1x1x128xf32>
    %15 = vector.shape_cast %14 : vector<1x1x128xf32> to vector<1x128xf32>
    %16 = vector.broadcast %15 : vector<1x128xf32> to vector<8x128xf32>
    %17 = arith.addf %13, %16 : vector<8x128xf32>
    %18 = arith.negf %17 : vector<8x128xf32>
    %19 = math.exp %18 : vector<8x128xf32>
    %cst_15 = arith.constant 1.000000e+00 : f32
    %20 = vector.broadcast %cst_15 : f32 to vector<8x128xf32>
    %21 = arith.addf %20, %19 : vector<8x128xf32>
    %22 = arith.divf %20, %21 : vector<8x128xf32>
    %23 = arith.subf %10, %0 : vector<8x128xf32>
    %24 = arith.mulf %22, %23 : vector<8x128xf32>
    %25 = arith.addf %0, %24 : vector<8x128xf32>
    %26 = arith.truncf %25 : vector<8x128xf32> to vector<8x128xbf16>
    %c1 = arith.constant 1 : index
    %c0_16 = arith.constant 0 : index
    %c0_17 = arith.constant 0 : index
    %27 = vector.load %arg2[%c1, %c0_16, %c0_17] : memref<2x128x128xbf16, #tpu.memory_space<vmem>>, vector<1x128x128xbf16>
    %28 = vector.shape_cast %27 : vector<1x128x128xbf16> to vector<128x128xbf16>
    %cst_18 = arith.constant dense<0.000000e+00> : vector<8x128xf32>
    %29 = tpu.matmul %26, %28, %cst_18 {dimension_numbers = #tpu.dot_dimension_numbers<[1], [1], [0], [0], [0, 0, 1, 0], [], []>} : vector<8x128xbf16>, vector<128x128xbf16>, vector<8x128xf32> -> vector<8x128xf32>
    %c1_19 = arith.constant 1 : index
    %c0_20 = arith.constant 0 : index
    %c0_21 = arith.constant 0 : index
    %30 = vector.load %arg3[%c1_19, %c0_20, %c0_21] : memref<2x1x128xf32, #tpu.memory_space<vmem>>, vector<1x1x128xf32>
    %31 = vector.shape_cast %30 : vector<1x1x128xf32> to vector<1x128xf32>
    %32 = vector.broadcast %31 : vector<1x128xf32> to vector<8x128xf32>
    %33 = arith.addf %29, %32 : vector<8x128xf32>
    %cst_22 = arith.constant 0.000000e+00 : f32
    %34 = vector.broadcast %cst_22 : f32 to vector<8x128xf32>
    %35 = arith.maximumf %33, %34 : vector<8x128xf32>
    %c1_23 = arith.constant 1 : index
    %c0_24 = arith.constant 0 : index
    %c0_25 = arith.constant 0 : index
    %36 = vector.load %arg4[%c1_23, %c0_24, %c0_25] : memref<2x128x128xbf16, #tpu.memory_space<vmem>>, vector<1x128x128xbf16>
    %37 = vector.shape_cast %36 : vector<1x128x128xbf16> to vector<128x128xbf16>
    %cst_26 = arith.constant dense<0.000000e+00> : vector<8x128xf32>
    %38 = tpu.matmul %26, %37, %cst_26 {dimension_numbers = #tpu.dot_dimension_numbers<[1], [1], [0], [0], [0, 0, 1, 0], [], []>} : vector<8x128xbf16>, vector<128x128xbf16>, vector<8x128xf32> -> vector<8x128xf32>
    %c1_27 = arith.constant 1 : index
    %c0_28 = arith.constant 0 : index
    %c0_29 = arith.constant 0 : index
    %39 = vector.load %arg5[%c1_27, %c0_28, %c0_29] : memref<2x1x128xf32, #tpu.memory_space<vmem>>, vector<1x1x128xf32>
    %40 = vector.shape_cast %39 : vector<1x1x128xf32> to vector<1x128xf32>
    %41 = vector.broadcast %40 : vector<1x128xf32> to vector<8x128xf32>
    %42 = arith.addf %38, %41 : vector<8x128xf32>
    %43 = arith.negf %42 : vector<8x128xf32>
    %44 = math.exp %43 : vector<8x128xf32>
    %cst_30 = arith.constant 1.000000e+00 : f32
    %45 = vector.broadcast %cst_30 : f32 to vector<8x128xf32>
    %46 = arith.addf %45, %44 : vector<8x128xf32>
    %47 = arith.divf %45, %46 : vector<8x128xf32>
    %48 = arith.subf %35, %25 : vector<8x128xf32>
    %49 = arith.mulf %47, %48 : vector<8x128xf32>
    %50 = arith.addf %25, %49 : vector<8x128xf32>
    %c0_31 = arith.constant 0 : index
    %c0_32 = arith.constant 0 : index
    %51 = vector.load %arg6[%c0_31, %c0_32] : memref<8x128xf32, #tpu.memory_space<vmem>>, vector<8x128xf32>
    tpu.vector_store %arg6[%c0_31, %c0_32], %50 {strides = array<i32>} : memref<8x128xf32, #tpu.memory_space<vmem>>, vector<8x128xf32>,
    return
  }
  func.func @transform_0(%arg0: i32) -> (i32, i32) {
    %c0_i32 = arith.constant 0 : i32
    %c0_i32_0 = arith.constant 0 : i32
    return %arg0, %c0_i32 : i32, i32
  }
  func.func @transform_1(%arg0: i32) -> (i32, i32, i32) {
    %c0_i32 = arith.constant 0 : i32
    %c0_i32_0 = arith.constant 0 : i32
    %c0_i32_1 = arith.constant 0 : i32
    %c0_i32_2 = arith.constant 0 : i32
    return %c0_i32, %c0_i32_0, %c0_i32_1 : i32, i32, i32
  }
  func.func @transform_2(%arg0: i32) -> (i32, i32, i32) {
    %c0_i32 = arith.constant 0 : i32
    %c0_i32_0 = arith.constant 0 : i32
    %c0_i32_1 = arith.constant 0 : i32
    %c0_i32_2 = arith.constant 0 : i32
    return %c0_i32, %c0_i32_0, %c0_i32_1 : i32, i32, i32
  }
  func.func @transform_3(%arg0: i32) -> (i32, i32, i32) {
    %c0_i32 = arith.constant 0 : i32
    %c0_i32_0 = arith.constant 0 : i32
    %c0_i32_1 = arith.constant 0 : i32
    %c0_i32_2 = arith.constant 0 : i32
    return %c0_i32, %c0_i32_0, %c0_i32_1 : i32, i32, i32
  }
  func.func @transform_4(%arg0: i32) -> (i32, i32, i32) {
    %c0_i32 = arith.constant 0 : i32
    %c0_i32_0 = arith.constant 0 : i32
    %c0_i32_1 = arith.constant 0 : i32
    %c0_i32_2 = arith.constant 0 : i32
    return %c0_i32, %c0_i32_0, %c0_i32_1 : i32, i32, i32
  }
  func.func @transform_5(%arg0: i32) -> (i32, i32) {
    %c0_i32 = arith.constant 0 : i32
    %c0_i32_0 = arith.constant 0 : i32
    return %arg0, %c0_i32 : i32, i32
  }
}

</mosaic_0001>

<llo_original>
// kernel: tpu_custom_call.1
$region0: #{tpu_custom_call.1}
  #allocation0 [shape = 'u32[]', space=smem, size = 0x4, offset = 0x4, fixed_abs, tag = 'smem constant byte address 0x4 - core index']
  #allocation1 [shape = 'u32[144,128]{1,0:T(1,128)}', space=vmem, size = 0x12000, scoped, tag = 'internal scratch']
  %s0 = inlined_call_operand.hbm [shape: f32[16,128], index: 0, kind: input, shape index: {}]
  %s1 = inlined_call_operand.hbm [shape: bf16[2,128,128], index: 1, kind: input, shape index: {}]
  %s2 = inlined_call_operand.vmem [shape: f32[2,1,128], index: 2, kind: input, shape index: {}]
  %s3 = inlined_call_operand.hbm [shape: bf16[2,128,128], index: 3, kind: input, shape index: {}]
  %s4 = inlined_call_operand.vmem [shape: f32[2,1,128], index: 4, kind: input, shape index: {}]
  %s5 = inlined_call_operand.hbm [shape: f32[16,128], index: 5, kind: output, shape index: {}]
  %s6 = sld [smem:[#allocation0]]
  $region65: #{tpu_custom_call.1} parent=0
    _
  %s8 = ssub.s32 1, %s6
  %s9 = scalar_select 0, %s8, %s6
  $region1: #{tpu_custom_call.1} parent=0
    #allocation2 [shape = 'u8[8192]{0}', space=vmem, size = 0x2000, scoped, tag = 'input window, operand 0']
    #allocation3 [shape = 's32[2]{0}', space=sflag, size = 0x8, scoped, tag = 'scoped memory for tpu_custom_call.1']
    #allocation4 [shape = 's32[2]{0}', space=sflag, size = 0x8, scoped, tag = 'scoped memory for tpu_custom_call.1']
    #allocation5 [shape = 'u8[65536]{0}', space=vmem, size = 0x10000, scoped, tag = 'input window, operand 1, single buffered']
    #allocation6 [shape = 's32[1]{0}', space=sflag, size = 0x4, scoped, tag = 'scoped memory for tpu_custom_call.1']
    #allocation7 [shape = 'u8[65536]{0}', space=vmem, size = 0x10000, scoped, tag = 'input window, operand 3, single buffered']
    #allocation8 [shape = 'u8[8192]{0}', space=vmem, size = 0x2000, scoped, tag = 'output window, operand 0']
    %10 = vsyncpa [#allocation3], 0
    %s11 = scalar_lea.sflag [#allocation3], 1
    %12 = vsyncpa %s11, 0
    %13 = vsyncpa [#allocation6], 0
    %14 = vsyncpa [#allocation4], 0
    %s15 = scalar_lea.sflag [#allocation4], 1
    %16 = vsyncpa %s15, 0
    loop: start=0, step=1, limit=4
    $region2: #{tpu_custom_call.1} parent=1 // loop_pre_header
      _
    $region3: #{tpu_custom_call.1} parent=1 // loop_header
      %s18 = sphi 0, %s22
      %p19 = scmp.ge.s32.totalorder %s18, 4
      %s28 = sphi 0, %s30
      %s31 = sphi 0, %s28
      %s32 = sphi 0, %s31
      %s48 = sphi 0, %s32
      %s52 = sphi 0, %s52
      %s54 = sphi 0, %s52
      %s55 = sphi 0, %s54
      %s69 = sphi 0, %s55
      %s73 = sphi 0, %s73
      %s75 = sphi 0, %s73
      %s76 = sphi 0, %s75
      %s90 = sphi 0, %s76
      %s94 = sphi 0, %s94
      %s96 = sphi 0, %s94
      %s97 = sphi 0, %s96
      %s111 = sphi 0, %s97
      %s115 = sphi 0, %s115
      %s117 = sphi 0, %s115
      %s118 = sphi 0, %s117
      %s132 = sphi 0, %s118
      %s138 = sphi 0, %s140
      %s141 = sphi 0, %s138
      %s142 = sphi 0, %s141
      %s158 = sphi 0, %s142
    $region4: #{tpu_custom_call.1} parent=1 // loop_header_branch
      %21 = sbr.rel (%p19) target = $region8
    $region5: #{tpu_custom_call.1} parent=1 // loop_body
      %s23 = ssub.s32 %s18, 1
      %s24 = ssub.s32 %s18, 2
      %s25 = sadd.s32 %s18, 1
      %s26 = ssub.s32 %s18, %s25
      %p27 = scmp.eq.s32.totalorder %s26, 0
      %s29 = sadd.s32 %s28, 1
      %s30 = scalar_select %p27, %s28, %s29
      %p33 = pneg %p27
      %p34 = scmp.eq.s32.totalorder %s18, 1
      %p35 = por %p33, %p34
      %p36 = scmp.ne.s32.totalorder %s28, %s31
      %p37 = scmp.eq.s32.totalorder %s18, 0
      %p38 = por %p36, %p37
      %p39 = scmp.ne.s32.totalorder %s28, %s31
      %p40 = scmp.eq.s32.totalorder %s23, 1
      %p41 = por %p39, %p40
      %p42 = scmp.ne.s32.totalorder %s31, %s32
      %p43 = scmp.eq.s32.totalorder %s23, 0
      %p44 = por %p42, %p43
      %p45 = scmp.ne.s32.totalorder %s31, %s32
      %p46 = scmp.eq.s32.totalorder %s24, 1
      %p47 = por %p45, %p46
      %p49 = scmp.ne.s32.totalorder %s32, %s48
      %p50 = scmp.eq.s32.totalorder %s24, 0
      %p51 = por %p49, %p50
      %s53 = sadd.s32 %s52, 1
      %p56 = scmp.eq.s32.totalorder %s18, 1
      %p57 = scmp.ne.s32.totalorder %s52, %s54
      %p58 = scmp.eq.s32.totalorder %s18, 0
      %p59 = por %p57, %p58
      %p60 = scmp.ne.s32.totalorder %s52, %s54
      %p61 = scmp.eq.s32.totalorder %s23, 1
      %p62 = por %p60, %p61
      %p63 = scmp.ne.s32.totalorder %s54, %s55
      %p64 = scmp.eq.s32.totalorder %s23, 0
      %p65 = por %p63, %p64
      %p66 = scmp.ne.s32.totalorder %s54, %s55
      %p67 = scmp.eq.s32.totalorder %s24, 1
      %p68 = por %p66, %p67
      %p70 = scmp.ne.s32.totalorder %s55, %s69
      %p71 = scmp.eq.s32.totalorder %s24, 0
      %p72 = por %p70, %p71
      %s74 = sadd.s32 %s73, 1
      %p77 = scmp.eq.s32.totalorder %s18, 1
      %p78 = scmp.ne.s32.totalorder %s73, %s75
      %p79 = scmp.eq.s32.totalorder %s18, 0
      %p80 = por %p78, %p79
      %p81 = scmp.ne.s32.totalorder %s73, %s75
      %p82 = scmp.eq.s32.totalorder %s23, 1
      %p83 = por %p81, %p82
      %p84 = scmp.ne.s32.totalorder %s75, %s76
      %p85 = scmp.eq.s32.totalorder %s23, 0
      %p86 = por %p84, %p85
      %p87 = scmp.ne.s32.totalorder %s75, %s76
      %p88 = scmp.eq.s32.totalorder %s24, 1
      %p89 = por %p87, %p88
      %p91 = scmp.ne.s32.totalorder %s76, %s90
      %p92 = scmp.eq.s32.totalorder %s24, 0
      %p93 = por %p91, %p92
      %s95 = sadd.s32 %s94, 1
      %p98 = scmp.eq.s32.totalorder %s18, 1
      %p99 = scmp.ne.s32.totalorder %s94, %s96
      %p100 = scmp.eq.s32.totalorder %s18, 0
      %p101 = por %p99, %p100
      %p102 = scmp.ne.s32.totalorder %s94, %s96
      %p103 = scmp.eq.s32.totalorder %s23, 1
      %p104 = por %p102, %p103
      %p105 = scmp.ne.s32.totalorder %s96, %s97
      %p106 = scmp.eq.s32.totalorder %s23, 0
      %p107 = por %p105, %p106
      %p108 = scmp.ne.s32.totalorder %s96, %s97
      %p109 = scmp.eq.s32.totalorder %s24, 1
      %p110 = por %p108, %p109
      %p112 = scmp.ne.s32.totalorder %s97, %s111
      %p113 = scmp.eq.s32.totalorder %s24, 0
      %p114 = por %p112, %p113
      %s116 = sadd.s32 %s115, 1
      %p119 = scmp.eq.s32.totalorder %s18, 1
      %p120 = scmp.ne.s32.totalorder %s115, %s117
      %p121 = scmp.eq.s32.totalorder %s18, 0
      %p122 = por %p120, %p121
      %p123 = scmp.ne.s32.totalorder %s115, %s117
      %p124 = scmp.eq.s32.totalorder %s23, 1
      %p125 = por %p123, %p124
      %p126 = scmp.ne.s32.totalorder %s117, %s118
      %p127 = scmp.eq.s32.totalorder %s23, 0
      %p128 = por %p126, %p127
      %p129 = scmp.ne.s32.totalorder %s117, %s118
      %p130 = scmp.eq.s32.totalorder %s24, 1
      %p131 = por %p129, %p130
      %p133 = scmp.ne.s32.totalorder %s118, %s132
      %p134 = scmp.eq.s32.totalorder %s24, 0
      %p135 = por %p133, %p134
      %s136 = ssub.s32 %s18, %s25
      %p137 = scmp.eq.s32.totalorder %s136, 0
      %s139 = sadd.s32 %s138, 1
      %s140 = scalar_select %p137, %s138, %s139
      %p143 = pneg %p137
      %p144 = scmp.eq.s32.totalorder %s18, 1
      %p145 = por %p143, %p144
      %p146 = scmp.ne.s32.totalorder %s138, %s141
      %p147 = scmp.eq.s32.totalorder %s18, 0
      %p148 = por %p146, %p147
      %p149 = scmp.ne.s32.totalorder %s138, %s141
      %p150 = scmp.eq.s32.totalorder %s23, 1
      %p151 = por %p149, %p150
      %p152 = scmp.ne.s32.totalorder %s141, %s142
      %p153 = scmp.eq.s32.totalorder %s23, 0
      %p154 = por %p152, %p153
      %p155 = scmp.ne.s32.totalorder %s141, %s142
      %p156 = scmp.eq.s32.totalorder %s24, 1
      %p157 = por %p155, %p156
      %p159 = scmp.ne.s32.totalorder %s142, %s158
      %p160 = scmp.eq.s32.totalorder %s24, 0
      %p161 = por %p159, %p160
      %p162 = scmp.le.s32.totalorder 1, %s18
      %p163 = scmp.lt.s32.totalorder %s18, 3
      %p164 = pnand %p162, %p163
      %p165 = pneg %p164
      // Predicated region
      $region9: #{tpu_custom_call.1} parent=5 // pred_check
        _
      $region10: #{tpu_custom_call.1} parent=5 // pred_check_branch
        %167 = sbr.rel (%p164) target = $region12
      $region11: #{tpu_custom_call.1} parent=5 // pred_region
        %s168 = ssub.s32 %s18, 1
        // Predicated region
        $region13: #{tpu_custom_call.1} parent=11 // pred_check
          %p169 = pneg %p65
        $region14: #{tpu_custom_call.1} parent=11 // pred_check_branch
          %171 = sbr.rel (%p169) target = $region16
        $region15: #{tpu_custom_call.1} parent=11 // pred_region
          %s173 = ssub.s32 2048, 2048
          %174 = vsyncadd [#allocation6], %s173
          %s175 = sshll.u32 [#allocation5], 4
          %s176 = int_to_ptr.vmem [resolvable:$true] %s175
          %181 = dma.hbm_to_vmem [thread:$0]  %s1, 2048, %s176, [#allocation6], 64, 64, 4
        $region16: #{tpu_custom_call.1} parent=11 // pred_fallthru
          _
        // Predicated region
        $region17: #{tpu_custom_call.1} parent=11 // pred_check
          %p182 = pneg %p86
        $region18: #{tpu_custom_call.1} parent=11 // pred_check_branch
          %184 = sbr.rel (%p182) target = $region20
        $region19: #{tpu_custom_call.1} parent=11 // pred_region
          _
        $region20: #{tpu_custom_call.1} parent=11 // pred_fallthru
          _
        // Predicated region
        $region21: #{tpu_custom_call.1} parent=11 // pred_check
          %p185 = pneg %p107
        $region22: #{tpu_custom_call.1} parent=11 // pred_check_branch
          %187 = sbr.rel (%p185) target = $region24
        $region23: #{tpu_custom_call.1} parent=11 // pred_region
          %s189 = ssub.s32 2048, 2048
          %190 = vsyncadd [#allocation6], %s189
          %s191 = sshll.u32 [#allocation7], 4
          %s192 = int_to_ptr.vmem [resolvable:$true] %s191
          %197 = dma.hbm_to_vmem [thread:$0]  %s3, 2048, %s192, [#allocation6], 64, 64, 4
        $region24: #{tpu_custom_call.1} parent=11 // pred_fallthru
          _
        // Predicated region
        $region25: #{tpu_custom_call.1} parent=11 // pred_check
          %p198 = pneg %p128
        $region26: #{tpu_custom_call.1} parent=11 // pred_check_branch
          %200 = sbr.rel (%p198) target = $region28
        $region27: #{tpu_custom_call.1} parent=11 // pred_region
          _
        $region28: #{tpu_custom_call.1} parent=11 // pred_fallthru
          _
      $region12: #{tpu_custom_call.1} parent=5 // pred_fallthru
        _
      %p201 = scmp.lt.s32.totalorder %s18, 2
      // Predicated region
      $region29: #{tpu_custom_call.1} parent=5 // pred_check
        %p202 = pneg %p201
      $region30: #{tpu_custom_call.1} parent=5 // pred_check_branch
        %204 = sbr.rel (%p202) target = $region32
      $region31: #{tpu_custom_call.1} parent=5 // pred_region
        // Predicated region
        $region33: #{tpu_custom_call.1} parent=31 // pred_check
          %p205 = pneg %p38
        $region34: #{tpu_custom_call.1} parent=31 // pred_check_branch
          %207 = sbr.rel (%p205) target = $region36
        $region35: #{tpu_custom_call.1} parent=31 // pred_region
          %s208 = sand.u32 %s28, 1
          %s209 = scalar_lea.sflag [#allocation3], %s208
          %s210 = sand.u32 %s28, 1
          %s211 = smul.addr %s210, 8
          %s212 = scalar_lea.vmem [#allocation2], %s211
          %s214 = ssub.s32 128, 128
          %215 = vsyncadd %s209, %s214
          %s216 = smul.addr %s18, 128
          %s217 = scalar_lea.hbm %s0, %s216
          %s219 = sshll.u32 %s212, 4
          %s220 = int_to_ptr.vmem [resolvable:$true] %s219
          %222 = dma.hbm_to_vmem [thread:$0]  %s217, 128, %s220, %s209
        $region36: #{tpu_custom_call.1} parent=31 // pred_fallthru
          _
      $region32: #{tpu_custom_call.1} parent=5 // pred_fallthru
        _
      %p223 = scmp.le.s32.totalorder 1, %s18
      %p224 = scmp.lt.s32.totalorder %s18, 3
      %p225 = pnand %p223, %p224
      %p226 = pneg %p225
      // Predicated region
      $region37: #{tpu_custom_call.1} parent=5 // pred_check
        _
      $region38: #{tpu_custom_call.1} parent=5 // pred_check_branch
        %228 = sbr.rel (%p225) target = $region40
      $region39: #{tpu_custom_call.1} parent=5 // pred_region
        %s229 = ssub.s32 %s18, 1
        %s230 = sand.u32 %s31, 1
        %s231 = scalar_lea.sflag [#allocation3], %s230
        %s232 = sand.u32 %s31, 1
        %s233 = smul.addr %s232, 8
        %s234 = scalar_lea.vmem [#allocation2], %s233
        // Predicated region
        $region41: #{tpu_custom_call.1} parent=39 // pred_check
          %p235 = pneg %p44
        $region42: #{tpu_custom_call.1} parent=39 // pred_check_branch
          %237 = sbr.rel (%p235) target = $region44
        $region43: #{tpu_custom_call.1} parent=39 // pred_region
          %238 = dma.done %s231, 128
        $region44: #{tpu_custom_call.1} parent=39 // pred_fallthru
          _
        // Predicated region
        $region45: #{tpu_custom_call.1} parent=39 // pred_check
          %p239 = pneg %p65
        $region46: #{tpu_custom_call.1} parent=39 // pred_check_branch
          %241 = sbr.rel (%p239) target = $region48
        $region47: #{tpu_custom_call.1} parent=39 // pred_region
          %242 = dma.done [#allocation6], 2048
        $region48: #{tpu_custom_call.1} parent=39 // pred_fallthru
          _
        // Predicated region
        $region49: #{tpu_custom_call.1} parent=39 // pred_check
          %p243 = pneg %p107
        $region50: #{tpu_custom_call.1} parent=39 // pred_check_branch
          %245 = sbr.rel (%p243) target = $region52
        $region51: #{tpu_custom_call.1} parent=39 // pred_region
          %246 = dma.done [#allocation6], 2048
        $region52: #{tpu_custom_call.1} parent=39 // pred_fallthru
          _
        %s247 = sand.u32 %s31, 1
        %s248 = scalar_lea.sflag [#allocation3], %s247
        %s249 = sand.u32 %s31, 1
        %s250 = smul.addr %s249, 8
        %s251 = scalar_lea.vmem [#allocation2], %s250
        %p252 = pneg %p44
        %p253 = pneg %p41
        %p254 = pneg %p65
        %p255 = pneg %p62
        %p256 = pneg %p86
        %p257 = pneg %p83
        %p258 = pneg %p107
        %p259 = pneg %p104
        %p260 = pneg %p128
        %p261 = pneg %p125
        %p262 = pneg %p154
        %p263 = pneg %p151
        %s264 = sand.u32 %s141, 1
        %s265 = scalar_lea.sflag [#allocation4], %s264
        %s266 = sand.u32 %s141, 1
        %s267 = smul.addr %s266, 8
        %s268 = scalar_lea.vmem [#allocation8], %s267
        %v270 = vld [vmem:[%s234] sm:$0xff]
        %v271 = vpack.c.bf16 %v270, %v270
        %v272 = vld [vmem:[#allocation5] sm:$0xf]
        %v273 = vld [vmem:[#allocation5 + $0x4] sm:$0xf]
        %v274 = vld [vmem:[#allocation5 + $0x8] sm:$0xf]
        %v275 = vld [vmem:[#allocation5 + $0xc] sm:$0xf]
        %v276 = vld [vmem:[#allocation5 + $0x10] sm:$0xf]
        %v277 = vld [vmem:[#allocation5 + $0x14] sm:$0xf]
        %v278 = vld [vmem:[#allocation5 + $0x18] sm:$0xf]
        %v279 = vld [vmem:[#allocation5 + $0x1c] sm:$0xf]
        %v280 = vld [vmem:[#allocation5 + $0x20] sm:$0xf]
        %v281 = vld [vmem:[#allocation5 + $0x24] sm:$0xf]
        %v282 = vld [vmem:[#allocation5 + $0x28] sm:$0xf]
        %v283 = vld [vmem:[#allocation5 + $0x2c] sm:$0xf]
        %v284 = vld [vmem:[#allocation5 + $0x30] sm:$0xf]
        %v285 = vld [vmem:[#allocation5 + $0x34] sm:$0xf]
        %v286 = vld [vmem:[#allocation5 + $0x38] sm:$0xf]
        %v287 = vld [vmem:[#allocation5 + $0x3c] sm:$0xf]
        %v288 = vld [vmem:[%s2] sm:$0x1]
        %v290 = vlaneseq
        %v291 = vshrl.u32 %v290, 7
        %v292 = vsub.s32 0, %v291
        %v293 = vrot.slane %v288, %v292
        %v311 = vunpack.c.l.b16 %v272
        %v312 = vunpack.c.l.b16 %v273
        %v313 = vunpack.c.l.b16 %v274
        %v314 = vunpack.c.l.b16 %v275
        %v315 = vunpack.c.l.b16 %v276
        %v316 = vunpack.c.l.b16 %v277
        %v317 = vunpack.c.l.b16 %v278
        %v318 = vunpack.c.l.b16 %v279
        %v319 = vunpack.c.l.b16 %v280
        %v320 = vunpack.c.l.b16 %v281
        %v321 = vunpack.c.l.b16 %v282
        %v322 = vunpack.c.l.b16 %v283
        %v323 = vunpack.c.l.b16 %v284
        %v324 = vunpack.c.l.b16 %v285
        %v325 = vunpack.c.l.b16 %v286
        %v326 = vunpack.c.l.b16 %v287
        %v327 = vpack.c.b16 %v312, %v311
        %v328 = vpack.c.b16 %v314, %v313
        %v329 = vpack.c.b16 %v316, %v315
        %v330 = vpack.c.b16 %v318, %v317
        %v331 = vpack.c.b16 %v320, %v319
        %v332 = vpack.c.b16 %v322, %v321
        %v333 = vpack.c.b16 %v324, %v323
        %v334 = vpack.c.b16 %v326, %v325
        %343 = vmatprep.subr.bf16.mxu0 0
        %344 = vmatpush1.bf16.xpose.msra.mxu0 %v327
        %345 = vmatprep.subr.bf16.mxu0 0
        %346 = vmatpush1.bf16.xpose.msra.mxu0 %v328
        %347 = vmatprep.subr.bf16.mxu0 0
        %348 = vmatpush1.bf16.xpose.msra.mxu0 %v329
        %349 = vmatprep.subr.bf16.mxu0 0
        %350 = vmatpush1.bf16.xpose.msra.mxu0 %v330
        %351 = vmatprep.subr.bf16.mxu0 0
        %352 = vmatpush1.bf16.xpose.msra.mxu0 %v331
        %353 = vmatprep.subr.bf16.mxu0 0
        %354 = vmatpush1.bf16.xpose.msra.mxu0 %v332
        %355 = vmatprep.subr.bf16.mxu0 0
        %356 = vmatpush1.bf16.xpose.msra.mxu0 %v333
        %357 = vmatprep.subr.bf16.mxu0 0
        %358 = vmatpush1.bf16.xpose.msra.mxu0 %v334
        %359 = vmatprep.subr.bf16.mxu0 0
        %360 = vmatpush1.bf16.xpose.msra.mxu0 0
        %361 = vmatprep.subr.bf16.mxu0 0
        %362 = vmatpush1.bf16.xpose.msra.mxu0 0
        %363 = vmatprep.subr.bf16.mxu0 0
        %364 = vmatpush1.bf16.xpose.msra.mxu0 0
        %365 = vmatprep.subr.bf16.mxu0 0
        %366 = vmatpush1.bf16.xpose.msra.mxu0 0
        %367 = vmatprep.subr.bf16.mxu0 0
        %368 = vmatpush1.bf16.xpose.msra.mxu0 0
        %369 = vmatprep.subr.bf16.mxu0 0
        %370 = vmatpush1.bf16.xpose.msra.mxu0 0
        %371 = vmatprep.subr.bf16.mxu0 0
        %372 = vmatpush1.bf16.xpose.msra.mxu0 0
        %373 = vmatprep.subr.bf16.mxu0 0
        %374 = vmatpush1.bf16.xpose.msra.mxu0 0
        %375 = vmatprep.mubr.bf16.mxu0 0
        %376 = vmatmul.mubr.bf16.gmra.mrb[0].mxu0 %v271
        %v377 = vpop.f32.mrb[0].mxu0
        %v378 = vadd.f32 %v293, %v377
        %v379 = vpop.f32.mrb[0].mxu0
        %v380 = vpop.f32.mrb[0].mxu0
        %v381 = vpop.f32.mrb[0].mxu0
        %382 = vdwg.mxu0
        %v383 = vmax.f32 %v378, 0.0
        %v384 = vld [vmem:[#allocation7] sm:$0xf]
        %v385 = vld [vmem:[#allocation7 + $0x4] sm:$0xf]
        %v386 = vld [vmem:[#allocation7 + $0x8] sm:$0xf]
        %v387 = vld [vmem:[#allocation7 + $0xc] sm:$0xf]
        %v388 = vld [vmem:[#allocation7 + $0x10] sm:$0xf]
        %v389 = vld [vmem:[#allocation7 + $0x14] sm:$0xf]
        %v390 = vld [vmem:[#allocation7 + $0x18] sm:$0xf]
        %v391 = vld [vmem:[#allocation7 + $0x1c] sm:$0xf]
        %v392 = vld [vmem:[#allocation7 + $0x20] sm:$0xf]
        %v393 = vld [vmem:[#allocation7 + $0x24] sm:$0xf]
        %v394 = vld [vmem:[#allocation7 + $0x28] sm:$0xf]
        %v395 = vld [vmem:[#allocation7 + $0x2c] sm:$0xf]
        %v396 = vld [vmem:[#allocation7 + $0x30] sm:$0xf]
        %v397 = vld [vmem:[#allocation7 + $0x34] sm:$0xf]
        %v398 = vld [vmem:[#allocation7 + $0x38] sm:$0xf]
        %v399 = vld [vmem:[#allocation7 + $0x3c] sm:$0xf]
        %v400 = vld [vmem:[%s4] sm:$0x1]
        %v402 = vlaneseq
        %v403 = vshrl.u32 %v402, 7
        %v404 = vsub.s32 0, %v403
        %v405 = vrot.slane %v400, %v404
        %v423 = vunpack.c.l.b16 %v384
        %v424 = vunpack.c.l.b16 %v385
        %v425 = vunpack.c.l.b16 %v386
        %v426 = vunpack.c.l.b16 %v387
        %v427 = vunpack.c.l.b16 %v388
        %v428 = vunpack.c.l.b16 %v389
        %v429 = vunpack.c.l.b16 %v390
        %v430 = vunpack.c.l.b16 %v391
        %v431 = vunpack.c.l.b16 %v392
        %v432 = vunpack.c.l.b16 %v393
        %v433 = vunpack.c.l.b16 %v394
        %v434 = vunpack.c.l.b16 %v395
        %v435 = vunpack.c.l.b16 %v396
        %v436 = vunpack.c.l.b16 %v397
        %v437 = vunpack.c.l.b16 %v398
        %v438 = vunpack.c.l.b16 %v399
        %v439 = vpack.c.b16 %v424, %v423
        %v440 = vpack.c.b16 %v426, %v425
        %v441 = vpack.c.b16 %v428, %v427
        %v442 = vpack.c.b16 %v430, %v429
        %v443 = vpack.c.b16 %v432, %v431
        %v444 = vpack.c.b16 %v434, %v433
        %v445 = vpack.c.b16 %v436, %v435
        %v446 = vpack.c.b16 %v438, %v437
        %455 = vmatprep.subr.bf16.mxu0 0
        %456 = vmatpush1.bf16.xpose.msra.mxu0 %v439
        %457 = vmatprep.subr.bf16.mxu0 0
        %458 = vmatpush1.bf16.xpose.msra.mxu0 %v440
        %459 = vmatprep.subr.bf16.mxu0 0
        %460 = vmatpush1.bf16.xpose.msra.mxu0 %v441
        %461 = vmatprep.subr.bf16.mxu0 0
        %462 = vmatpush1.bf16.xpose.msra.mxu0 %v442
        %463 = vmatprep.subr.bf16.mxu0 0
        %464 = vmatpush1.bf16.xpose.msra.mxu0 %v443
        %465 = vmatprep.subr.bf16.mxu0 0
        %466 = vmatpush1.bf16.xpose.msra.mxu0 %v444
        %467 = vmatprep.subr.bf16.mxu0 0
        %468 = vmatpush1.bf16.xpose.msra.mxu0 %v445
        %469 = vmatprep.subr.bf16.mxu0 0
        %470 = vmatpush1.bf16.xpose.msra.mxu0 %v446
        %471 = vmatprep.subr.bf16.mxu0 0
        %472 = vmatpush1.bf16.xpose.msra.mxu0 0
        %473 = vmatprep.subr.bf16.mxu0 0
        %474 = vmatpush1.bf16.xpose.msra.mxu0 0
        %475 = vmatprep.subr.bf16.mxu0 0
        %476 = vmatpush1.bf16.xpose.msra.mxu0 0
        %477 = vmatprep.subr.bf16.mxu0 0
        %478 = vmatpush1.bf16.xpose.msra.mxu0 0
        %479 = vmatprep.subr.bf16.mxu0 0
        %480 = vmatpush1.bf16.xpose.msra.mxu0 0
        %481 = vmatprep.subr.bf16.mxu0 0
        %482 = vmatpush1.bf16.xpose.msra.mxu0 0
        %483 = vmatprep.subr.bf16.mxu0 0
        %484 = vmatpush1.bf16.xpose.msra.mxu0 0
        %485 = vmatprep.subr.bf16.mxu0 0
        %486 = vmatpush1.bf16.xpose.msra.mxu0 0
        %487 = vmatprep.mubr.bf16.mxu0 0
        %488 = vmatmul.mubr.bf16.gmra.mrb[0].mxu0 %v271
        %v489 = vpop.f32.mrb[0].mxu0
        %v490 = vadd.f32 %v405, %v489
        %v491 = vpop.f32.mrb[0].mxu0
        %v492 = vpop.f32.mrb[0].mxu0
        %v493 = vpop.f32.mrb[0].mxu0
        %494 = vdwg.mxu0
        %v495 = vxor.u32 %v490, 2147483648
        %v496 = vmul.f32 %v495, 1.442695
        %v497 = vpow.pop %v496
        %v498 = vadd.f32 %v497, 1.0
        %v499 = vrcp.pop %v498
        %v500 = vmul.f32 1.0, %v499
        %v501 = vsub.f32 %v383, %v270
        %v502 = vmul.f32 %v500, %v501
        %v503 = vadd.f32 %v270, %v502
        %v504 = vpack.c.bf16 %v503, %v503
        %s505 = scalar_lea.vmem [#allocation5], 64
        %v506 = vld [vmem:[%s505] sm:$0xf]
        %v507 = vld [vmem:[%s505 + $0x4] sm:$0xf]
        %v508 = vld [vmem:[%s505 + $0x8] sm:$0xf]
        %v509 = vld [vmem:[%s505 + $0xc] sm:$0xf]
        %v510 = vld [vmem:[%s505 + $0x10] sm:$0xf]
        %v511 = vld [vmem:[%s505 + $0x14] sm:$0xf]
        %v512 = vld [vmem:[%s505 + $0x18] sm:$0xf]
        %v513 = vld [vmem:[%s505 + $0x1c] sm:$0xf]
        %v514 = vld [vmem:[%s505 + $0x20] sm:$0xf]
        %v515 = vld [vmem:[%s505 + $0x24] sm:$0xf]
        %v516 = vld [vmem:[%s505 + $0x28] sm:$0xf]
        %v517 = vld [vmem:[%s505 + $0x2c] sm:$0xf]
        %v518 = vld [vmem:[%s505 + $0x30] sm:$0xf]
        %v519 = vld [vmem:[%s505 + $0x34] sm:$0xf]
        %v520 = vld [vmem:[%s505 + $0x38] sm:$0xf]
        %v521 = vld [vmem:[%s505 + $0x3c] sm:$0xf]
        %s522 = scalar_lea.vmem %s2, 1
        %v523 = vld [vmem:[%s522] sm:$0x1]
        %v525 = vlaneseq
        %v526 = vshrl.u32 %v525, 7
        %v527 = vsub.s32 0, %v526
        %v528 = vrot.slane %v523, %v527
        %v546 = vunpack.c.l.b16 %v506
        %v547 = vunpack.c.l.b16 %v507
        %v548 = vunpack.c.l.b16 %v508
        %v549 = vunpack.c.l.b16 %v509
        %v550 = vunpack.c.l.b16 %v510
        %v551 = vunpack.c.l.b16 %v511
        %v552 = vunpack.c.l.b16 %v512
        %v553 = vunpack.c.l.b16 %v513
        %v554 = vunpack.c.l.b16 %v514
        %v555 = vunpack.c.l.b16 %v515
        %v556 = vunpack.c.l.b16 %v516
        %v557 = vunpack.c.l.b16 %v517
        %v558 = vunpack.c.l.b16 %v518
        %v559 = vunpack.c.l.b16 %v519
        %v560 = vunpack.c.l.b16 %v520
        %v561 = vunpack.c.l.b16 %v521
        %v562 = vpack.c.b16 %v547, %v546
        %v563 = vpack.c.b16 %v549, %v548
        %v564 = vpack.c.b16 %v551, %v550
        %v565 = vpack.c.b16 %v553, %v552
        %v566 = vpack.c.b16 %v555, %v554
        %v567 = vpack.c.b16 %v557, %v556
        %v568 = vpack.c.b16 %v559, %v558
        %v569 = vpack.c.b16 %v561, %v560
        %578 = vmatprep.subr.bf16.mxu0 0
        %579 = vmatpush1.bf16.xpose.msra.mxu0 %v562
        %580 = vmatprep.subr.bf16.mxu0 0
        %581 = vmatpush1.bf16.xpose.msra.mxu0 %v563
        %582 = vmatprep.subr.bf16.mxu0 0
        %583 = vmatpush1.bf16.xpose.msra.mxu0 %v564
        %584 = vmatprep.subr.bf16.mxu0 0
        %585 = vmatpush1.bf16.xpose.msra.mxu0 %v565
        %586 = vmatprep.subr.bf16.mxu0 0
        %587 = vmatpush1.bf16.xpose.msra.mxu0 %v566
        %588 = vmatprep.subr.bf16.mxu0 0
        %589 = vmatpush1.bf16.xpose.msra.mxu0 %v567
        %590 = vmatprep.subr.bf16.mxu0 0
        %591 = vmatpush1.bf16.xpose.msra.mxu0 %v568
        %592 = vmatprep.subr.bf16.mxu0 0
        %593 = vmatpush1.bf16.xpose.msra.mxu0 %v569
        %594 = vmatprep.subr.bf16.mxu0 0
        %595 = vmatpush1.bf16.xpose.msra.mxu0 0
        %596 = vmatprep.subr.bf16.mxu0 0
        %597 = vmatpush1.bf16.xpose.msra.mxu0 0
        %598 = vmatprep.subr.bf16.mxu0 0
        %599 = vmatpush1.bf16.xpose.msra.mxu0 0
        %600 = vmatprep.subr.bf16.mxu0 0
        %601 = vmatpush1.bf16.xpose.msra.mxu0 0
        %602 = vmatprep.subr.bf16.mxu0 0
        %603 = vmatpush1.bf16.xpose.msra.mxu0 0
        %604 = vmatprep.subr.bf16.mxu0 0
        %605 = vmatpush1.bf16.xpose.msra.mxu0 0
        %606 = vmatprep.subr.bf16.mxu0 0
        %607 = vmatpush1.bf16.xpose.msra.mxu0 0
        %608 = vmatprep.subr.bf16.mxu0 0
        %609 = vmatpush1.bf16.xpose.msra.mxu0 0
        %610 = vmatprep.mubr.bf16.mxu0 0
        %611 = vmatmul.mubr.bf16.gmra.mrb[0].mxu0 %v504
        %v612 = vpop.f32.mrb[0].mxu0
        %v613 = vadd.f32 %v528, %v612
        %v614 = vpop.f32.mrb[0].mxu0
        %v615 = vpop.f32.mrb[0].mxu0
        %v616 = vpop.f32.mrb[0].mxu0
        %617 = vdwg.mxu0
        %v618 = vmax.f32 %v613, 0.0
        %s619 = scalar_lea.vmem [#allocation7], 64
        %v620 = vld [vmem:[%s619] sm:$0xf]
        %v621 = vld [vmem:[%s619 + $0x4] sm:$0xf]
        %v622 = vld [vmem:[%s619 + $0x8] sm:$0xf]
        %v623 = vld [vmem:[%s619 + $0xc] sm:$0xf]
        %v624 = vld [vmem:[%s619 + $0x10] sm:$0xf]
        %v625 = vld [vmem:[%s619 + $0x14] sm:$0xf]
        %v626 = vld [vmem:[%s619 + $0x18] sm:$0xf]
        %v627 = vld [vmem:[%s619 + $0x1c] sm:$0xf]
        %v628 = vld [vmem:[%s619 + $0x20] sm:$0xf]
        %v629 = vld [vmem:[%s619 + $0x24] sm:$0xf]
        %v630 = vld [vmem:[%s619 + $0x28] sm:$0xf]
        %v631 = vld [vmem:[%s619 + $0x2c] sm:$0xf]
        %v632 = vld [vmem:[%s619 + $0x30] sm:$0xf]
        %v633 = vld [vmem:[%s619 + $0x34] sm:$0xf]
        %v634 = vld [vmem:[%s619 + $0x38] sm:$0xf]
        %v635 = vld [vmem:[%s619 + $0x3c] sm:$0xf]
        %s636 = scalar_lea.vmem %s4, 1
        %v637 = vld [vmem:[%s636] sm:$0x1]
        %v639 = vlaneseq
        %v640 = vshrl.u32 %v639, 7
        %v641 = vsub.s32 0, %v640
        %v642 = vrot.slane %v637, %v641
        %v660 = vunpack.c.l.b16 %v620
        %v661 = vunpack.c.l.b16 %v621
        %v662 = vunpack.c.l.b16 %v622
        %v663 = vunpack.c.l.b16 %v623
        %v664 = vunpack.c.l.b16 %v624
        %v665 = vunpack.c.l.b16 %v625
        %v666 = vunpack.c.l.b16 %v626
        %v667 = vunpack.c.l.b16 %v627
        %v668 = vunpack.c.l.b16 %v628
        %v669 = vunpack.c.l.b16 %v629
        %v670 = vunpack.c.l.b16 %v630
        %v671 = vunpack.c.l.b16 %v631
        %v672 = vunpack.c.l.b16 %v632
        %v673 = vunpack.c.l.b16 %v633
        %v674 = vunpack.c.l.b16 %v634
        %v675 = vunpack.c.l.b16 %v635
        %v676 = vpack.c.b16 %v661, %v660
        %v677 = vpack.c.b16 %v663, %v662
        %v678 = vpack.c.b16 %v665, %v664
        %v679 = vpack.c.b16 %v667, %v666
        %v680 = vpack.c.b16 %v669, %v668
        %v681 = vpack.c.b16 %v671, %v670
        %v682 = vpack.c.b16 %v673, %v672
        %v683 = vpack.c.b16 %v675, %v674
        %692 = vmatprep.subr.bf16.mxu0 0
        %693 = vmatpush1.bf16.xpose.msra.mxu0 %v676
        %694 = vmatprep.subr.bf16.mxu0 0
        %695 = vmatpush1.bf16.xpose.msra.mxu0 %v677
        %696 = vmatprep.subr.bf16.mxu0 0
        %697 = vmatpush1.bf16.xpose.msra.mxu0 %v678
        %698 = vmatprep.subr.bf16.mxu0 0
        %699 = vmatpush1.bf16.xpose.msra.mxu0 %v679
        %700 = vmatprep.subr.bf16.mxu0 0
        %701 = vmatpush1.bf16.xpose.msra.mxu0 %v680
        %702 = vmatprep.subr.bf16.mxu0 0
        %703 = vmatpush1.bf16.xpose.msra.mxu0 %v681
        %704 = vmatprep.subr.bf16.mxu0 0
        %705 = vmatpush1.bf16.xpose.msra.mxu0 %v682
        %706 = vmatprep.subr.bf16.mxu0 0
        %707 = vmatpush1.bf16.xpose.msra.mxu0 %v683
        %708 = vmatprep.subr.bf16.mxu0 0
        %709 = vmatpush1.bf16.xpose.msra.mxu0 0
        %710 = vmatprep.subr.bf16.mxu0 0
        %711 = vmatpush1.bf16.xpose.msra.mxu0 0
        %712 = vmatprep.subr.bf16.mxu0 0
        %713 = vmatpush1.bf16.xpose.msra.mxu0 0
        %714 = vmatprep.subr.bf16.mxu0 0
        %715 = vmatpush1.bf16.xpose.msra.mxu0 0
        %716 = vmatprep.subr.bf16.mxu0 0
        %717 = vmatpush1.bf16.xpose.msra.mxu0 0
        %718 = vmatprep.subr.bf16.mxu0 0
        %719 = vmatpush1.bf16.xpose.msra.mxu0 0
        %720 = vmatprep.subr.bf16.mxu0 0
        %721 = vmatpush1.bf16.xpose.msra.mxu0 0
        %722 = vmatprep.subr.bf16.mxu0 0
        %723 = vmatpush1.bf16.xpose.msra.mxu0 0
        %724 = vmatprep.mubr.bf16.mxu0 0
        %725 = vmatmul.mubr.bf16.gmra.mrb[0].mxu0 %v504
        %v726 = vpop.f32.mrb[0].mxu0
        %v727 = vadd.f32 %v642, %v726
        %v728 = vpop.f32.mrb[0].mxu0
        %v729 = vpop.f32.mrb[0].mxu0
        %v730 = vpop.f32.mrb[0].mxu0
        %731 = vdwg.mxu0
        %v732 = vxor.u32 %v727, 2147483648
        %v733 = vmul.f32 %v732, 1.442695
        %v734 = vpow.pop %v733
        %v735 = vadd.f32 %v734, 1.0
        %v736 = vrcp.pop %v735
        %v737 = vmul.f32 1.0, %v736
        %v738 = vsub.f32 %v618, %v503
        %v739 = vmul.f32 %v737, %v738
        %v740 = vadd.f32 %v503, %v739
        %741 = vst [vmem:[%s268] sm:$0xff] %v740
        %s742 = sand.u32 %s141, 1
        %s743 = scalar_lea.sflag [#allocation4], %s742
        %s744 = sand.u32 %s141, 1
        %s745 = smul.addr %s744, 8
        %s746 = scalar_lea.vmem [#allocation8], %s745
        // Predicated region
        $region53: #{tpu_custom_call.1} parent=39 // pred_check
          %p747 = pneg %p151
        $region54: #{tpu_custom_call.1} parent=39 // pred_check_branch
          %749 = sbr.rel (%p747) target = $region56
        $region55: #{tpu_custom_call.1} parent=39 // pred_region
          %s751 = ssub.s32 128, 128
          %752 = vsyncadd %s743, %s751
          %s753 = smul.addr %s23, 128
          %s754 = scalar_lea.hbm %s5, %s753
          %s756 = sshll.u32 %s746, 4
          %s757 = int_to_ptr.vmem [resolvable:$true] %s756
          %759 = dma.vmem_to_hbm [thread:$0]  %s757, 128, %s754, %s743
        $region56: #{tpu_custom_call.1} parent=39 // pred_fallthru
          _
      $region40: #{tpu_custom_call.1} parent=5 // pred_fallthru
        _
      %p760 = scmp.le.s32.totalorder 2, %s18
      // Predicated region
      $region57: #{tpu_custom_call.1} parent=5 // pred_check
        %p761 = pneg %p760
      $region58: #{tpu_custom_call.1} parent=5 // pred_check_branch
        %763 = sbr.rel (%p761) target = $region60
      $region59: #{tpu_custom_call.1} parent=5 // pred_region
        %s764 = ssub.s32 %s18, 2
        // Predicated region
        $region61: #{tpu_custom_call.1} parent=59 // pred_check
          %p765 = pneg %p157
        $region62: #{tpu_custom_call.1} parent=59 // pred_check_branch
          %767 = sbr.rel (%p765) target = $region64
        $region63: #{tpu_custom_call.1} parent=59 // pred_region
          %s768 = sand.u32 %s142, 1
          %s769 = scalar_lea.sflag [#allocation4], %s768
          %s770 = sand.u32 %s142, 1
          %s771 = smul.addr %s770, 8
          %s772 = scalar_lea.vmem [#allocation8], %s771
          %773 = dma.done %s769, 128
        $region64: #{tpu_custom_call.1} parent=59 // pred_fallthru
          _
      $region60: #{tpu_custom_call.1} parent=5 // pred_fallthru
        _
    $region6: #{tpu_custom_call.1} parent=1 // loop_footer
      %s22 = sadd.s32 1, %s18
    $region7: #{tpu_custom_call.1} parent=1 // loop_footer_branch
      %17 = sbr.rel target = $region3
    $region8: #{tpu_custom_call.1} parent=1 // loop_exit
      _
    %774 = vsyncpa [#allocation3], 1
    %s775 = scalar_lea.sflag [#allocation3], 1
    %776 = vsyncpa %s775, 1
    %777 = vsyncpa [#allocation6], 1
    %778 = vsyncpa [#allocation4], 1
    %s779 = scalar_lea.sflag [#allocation4], 1
    %780 = vsyncpa %s779, 1

// kernel: tpu_custom_call.1
$region0: #{tpu_custom_call.1}
  #allocation0 [shape = 'u32[]', space=smem, size = 0x4, offset = 0x4, fixed_abs, tag = 'smem constant byte address 0x4 - core index']
  #allocation1 [shape = 'u32[144,128]{1,0:T(1,128)}', space=vmem, size = 0x12000, scoped, tag = 'internal scratch']
  %s0 = inlined_call_operand.hbm [shape: f32[16,128], index: 0, kind: input, shape index: {}]
  %s1 = inlined_call_operand.hbm [shape: bf16[2,128,128], index: 1, kind: input, shape index: {}]
  %s2 = inlined_call_operand.vmem [shape: f32[2,1,128], index: 2, kind: input, shape index: {}]
  %s3 = inlined_call_operand.hbm [shape: bf16[2,128,128], index: 3, kind: input, shape index: {}]
  %s4 = inlined_call_operand.vmem [shape: f32[2,1,128], index: 4, kind: input, shape index: {}]
  %s5 = inlined_call_operand.hbm [shape: f32[16,128], index: 5, kind: output, shape index: {}]
  %s6 = sld [smem:[#allocation0]]
  $region65: #{tpu_custom_call.1} parent=0
    _
  %s8 = ssub.s32 1, %s6
  %s9 = scalar_select 0, %s8, %s6
  $region1: #{tpu_custom_call.1} parent=0
    #allocation2 [shape = 'u8[8192]{0}', space=vmem, size = 0x2000, scoped, tag = 'input window, operand 0']
    #allocation3 [shape = 's32[2]{0}', space=sflag, size = 0x8, scoped, tag = 'scoped memory for tpu_custom_call.1']
    #allocation4 [shape = 's32[2]{0}', space=sflag, size = 0x8, scoped, tag = 'scoped memory for tpu_custom_call.1']
    #allocation5 [shape = 'u8[65536]{0}', space=vmem, size = 0x10000, scoped, tag = 'input window, operand 1, single buffered']
    #allocation6 [shape = 's32[1]{0}', space=sflag, size = 0x4, scoped, tag = 'scoped memory for tpu_custom_call.1']
    #allocation7 [shape = 'u8[65536]{0}', space=vmem, size = 0x10000, scoped, tag = 'input window, operand 3, single buffered']
    #allocation8 [shape = 'u8[8192]{0}', space=vmem, size = 0x2000, scoped, tag = 'output window, operand 0']
    %10 = vsyncpa [#allocation3], 0
    %s11 = scalar_lea.sflag [#allocation3], 1
    %12 = vsyncpa %s11, 0
    %13 = vsyncpa [#allocation6], 0
    %14 = vsyncpa [#allocation4], 0
    %s15 = scalar_lea.sflag [#allocation4], 1
    %16 = vsyncpa %s15, 0
    loop: start=0, step=1, limit=4
    $region2: #{tpu_custom_call.1} parent=1 // loop_pre_header
      _
    $region3: #{tpu_custom_call.1} parent=1 // loop_header
      %s18 = sphi 0, %s22
      %p19 = scmp.ge.s32.totalorder %s18, 4
      %s28 = sphi 0, %s30
      %s31 = sphi 0, %s28
      %s32 = sphi 0, %s31
      %s48 = sphi 0, %s32
      %s52 = sphi 0, %s52
      %s54 = sphi 0, %s52
      %s55 = sphi 0, %s54
      %s69 = sphi 0, %s55
      %s73 = sphi 0, %s73
      %s75 = sphi 0, %s73
      %s76 = sphi 0, %s75
      %s90 = sphi 0, %s76
      %s94 = sphi 0, %s94
      %s96 = sphi 0, %s94
      %s97 = sphi 0, %s96
      %s111 = sphi 0, %s97
      %s115 = sphi 0, %s115
      %s117 = sphi 0, %s115
      %s118 = sphi 0, %s117
      %s132 = sphi 0, %s118
      %s138 = sphi 0, %s140
      %s141 = sphi 0, %s138
      %s142 = sphi 0, %s141
      %s158 = sphi 0, %s142
    $region4: #{tpu_custom_call.1} parent=1 // loop_header_branch
      %21 = sbr.rel (%p19) target = $region8
    $region5: #{tpu_custom_call.1} parent=1 // loop_body
      %s23 = ssub.s32 %s18, 1
      %s24 = ssub.s32 %s18, 2
      %s25 = sadd.s32 %s18, 1
      %s26 = ssub.s32 %s18, %s25
      %p27 = scmp.eq.s32.totalorder %s26, 0
      %s29 = sadd.s32 %s28, 1
      %s30 = scalar_select %p27, %s28, %s29
      %p33 = pneg %p27
      %p34 = scmp.eq.s32.totalorder %s18, 1
      %p35 = por %p33, %p34
      %p36 = scmp.ne.s32.totalorder %s28, %s31
      %p37 = scmp.eq.s32.totalorder %s18, 0
      %p38 = por %p36, %p37
      %p39 = scmp.ne.s32.totalorder %s28, %s31
      %p40 = scmp.eq.s32.totalorder %s23, 1
      %p41 = por %p39, %p40
      %p42 = scmp.ne.s32.totalorder %s31, %s32
      %p43 = scmp.eq.s32.totalorder %s23, 0
      %p44 = por %p42, %p43
      %p45 = scmp.ne.s32.totalorder %s31, %s32
      %p46 = scmp.eq.s32.totalorder %s24, 1
      %p47 = por %p45, %p46
      %p49 = scmp.ne.s32.totalorder %s32, %s48
      %p50 = scmp.eq.s32.totalorder %s24, 0
      %p51 = por %p49, %p50
      %s53 = sadd.s32 %s52, 1
      %p56 = scmp.eq.s32.totalorder %s18, 1
      %p57 = scmp.ne.s32.totalorder %s52, %s54
      %p58 = scmp.eq.s32.totalorder %s18, 0
      %p59 = por %p57, %p58
      %p60 = scmp.ne.s32.totalorder %s52, %s54
      %p61 = scmp.eq.s32.totalorder %s23, 1
      %p62 = por %p60, %p61
      %p63 = scmp.ne.s32.totalorder %s54, %s55
      %p64 = scmp.eq.s32.totalorder %s23, 0
      %p65 = por %p63, %p64
      %p66 = scmp.ne.s32.totalorder %s54, %s55
      %p67 = scmp.eq.s32.totalorder %s24, 1
      %p68 = por %p66, %p67
      %p70 = scmp.ne.s32.totalorder %s55, %s69
      %p71 = scmp.eq.s32.totalorder %s24, 0
      %p72 = por %p70, %p71
      %s74 = sadd.s32 %s73, 1
      %p77 = scmp.eq.s32.totalorder %s18, 1
      %p78 = scmp.ne.s32.totalorder %s73, %s75
      %p79 = scmp.eq.s32.totalorder %s18, 0
      %p80 = por %p78, %p79
      %p81 = scmp.ne.s32.totalorder %s73, %s75
      %p82 = scmp.eq.s32.totalorder %s23, 1
      %p83 = por %p81, %p82
      %p84 = scmp.ne.s32.totalorder %s75, %s76
      %p85 = scmp.eq.s32.totalorder %s23, 0
      %p86 = por %p84, %p85
      %p87 = scmp.ne.s32.totalorder %s75, %s76
      %p88 = scmp.eq.s32.totalorder %s24, 1
      %p89 = por %p87, %p88
      %p91 = scmp.ne.s32.totalorder %s76, %s90
      %p92 = scmp.eq.s32.totalorder %s24, 0
      %p93 = por %p91, %p92
      %s95 = sadd.s32 %s94, 1
      %p98 = scmp.eq.s32.totalorder %s18, 1
      %p99 = scmp.ne.s32.totalorder %s94, %s96
      %p100 = scmp.eq.s32.totalorder %s18, 0
      %p101 = por %p99, %p100
      %p102 = scmp.ne.s32.totalorder %s94, %s96
      %p103 = scmp.eq.s32.totalorder %s23, 1
      %p104 = por %p102, %p103
      %p105 = scmp.ne.s32.totalorder %s96, %s97
      %p106 = scmp.eq.s32.totalorder %s23, 0
      %p107 = por %p105, %p106
      %p108 = scmp.ne.s32.totalorder %s96, %s97
      %p109 = scmp.eq.s32.totalorder %s24, 1
      %p110 = por %p108, %p109
      %p112 = scmp.ne.s32.totalorder %s97, %s111
      %p113 = scmp.eq.s32.totalorder %s24, 0
      %p114 = por %p112, %p113
      %s116 = sadd.s32 %s115, 1
      %p119 = scmp.eq.s32.totalorder %s18, 1
      %p120 = scmp.ne.s32.totalorder %s115, %s117
      %p121 = scmp.eq.s32.totalorder %s18, 0
      %p122 = por %p120, %p121
      %p123 = scmp.ne.s32.totalorder %s115, %s117
      %p124 = scmp.eq.s32.totalorder %s23, 1
      %p125 = por %p123, %p124
      %p126 = scmp.ne.s32.totalorder %s117, %s118
      %p127 = scmp.eq.s32.totalorder %s23, 0
      %p128 = por %p126, %p127
      %p129 = scmp.ne.s32.totalorder %s117, %s118
      %p130 = scmp.eq.s32.totalorder %s24, 1
      %p131 = por %p129, %p130
      %p133 = scmp.ne.s32.totalorder %s118, %s132
      %p134 = scmp.eq.s32.totalorder %s24, 0
      %p135 = por %p133, %p134
      %s136 = ssub.s32 %s18, %s25
      %p137 = scmp.eq.s32.totalorder %s136, 0
      %s139 = sadd.s32 %s138, 1
      %s140 = scalar_select %p137, %s138, %s139
      %p143 = pneg %p137
      %p144 = scmp.eq.s32.totalorder %s18, 1
      %p145 = por %p143, %p144
      %p146 = scmp.ne.s32.totalorder %s138, %s141
      %p147 = scmp.eq.s32.totalorder %s18, 0
      %p148 = por %p146, %p147
      %p149 = scmp.ne.s32.totalorder %s138, %s141
      %p150 = scmp.eq.s32.totalorder %s23, 1
      %p151 = por %p149, %p150
      %p152 = scmp.ne.s32.totalorder %s141, %s142
      %p153 = scmp.eq.s32.totalorder %s23, 0
      %p154 = por %p152, %p153
      %p155 = scmp.ne.s32.totalorder %s141, %s142
      %p156 = scmp.eq.s32.totalorder %s24, 1
      %p157 = por %p155, %p156
      %p159 = scmp.ne.s32.totalorder %s142, %s158
      %p160 = scmp.eq.s32.totalorder %s24, 0
      %p161 = por %p159, %p160
      %p162 = scmp.le.s32.totalorder 1, %s18
      %p163 = scmp.lt.s32.totalorder %s18, 3
      %p164 = pnand %p162, %p163
      %p165 = pneg %p164
      // Predicated region
      $region9: #{tpu_custom_call.1} parent=5 // pred_check
        _
      $region10: #{tpu_custom_call.1} parent=5 // pred_check_branch
        %167 = sbr.rel (%p164) target = $region12
      $region11: #{tpu_custom_call.1} parent=5 // pred_region
        %s168 = ssub.s32 %s18, 1
        // Predicated region
        $region13: #{tpu_custom_call.1} parent=11 // pred_check
          %p169 = pneg %p65
        $region14: #{tpu_custom_call.1} parent=11 // pred_check_branch
          %171 = sbr.rel (%p169) target = $region16
        $region15: #{tpu_custom_call.1} parent=11 // pred_region
          %s173 = ssub.s32 2048, 2048
          %174 = vsyncadd [#allocation6], %s173
          %s175 = sshll.u32 [#allocation5], 4
          %s176 = int_to_ptr.vmem [resolvable:$true] %s175
          %181 = dma.hbm_to_vmem [thread:$0]  %s1, 2048, %s176, [#allocation6], 64, 64, 4
        $region16: #{tpu_custom_call.1} parent=11 // pred_fallthru
          _
        // Predicated region
        $region17: #{tpu_custom_call.1} parent=11 // pred_check
          %p182 = pneg %p86
        $region18: #{tpu_custom_call.1} parent=11 // pred_check_branch
          %184 = sbr.rel (%p182) target = $region20
        $region19: #{tpu_custom_call.1} parent=11 // pred_region
          _
        $region20: #{tpu_custom_call.1} parent=11 // pred_fallthru
          _
        // Predicated region
        $region21: #{tpu_custom_call.1} parent=11 // pred_check
          %p185 = pneg %p107
        $region22: #{tpu_custom_call.1} parent=11 // pred_check_branch
          %187 = sbr.rel (%p185) target = $region24
        $region23: #{tpu_custom_call.1} parent=11 // pred_region
          %s189 = ssub.s32 2048, 2048
          %190 = vsyncadd [#allocation6], %s189
          %s191 = sshll.u32 [#allocation7], 4
          %s192 = int_to_ptr.vmem [resolvable:$true] %s191
          %197 = dma.hbm_to_vmem [thread:$0]  %s3, 2048, %s192, [#allocation6], 64, 64, 4
        $region24: #{tpu_custom_call.1} parent=11 // pred_fallthru
          _
        // Predicated region
        $region25: #{tpu_custom_call.1} parent=11 // pred_check
          %p198 = pneg %p128
        $region26: #{tpu_custom_call.1} parent=11 // pred_check_branch
          %200 = sbr.rel (%p198) target = $region28
        $region27: #{tpu_custom_call.1} parent=11 // pred_region
          _
        $region28: #{tpu_custom_call.1} parent=11 // pred_fallthru
          _
      $region12: #{tpu_custom_call.1} parent=5 // pred_fallthru
        _
      %p201 = scmp.lt.s32.totalorder %s18, 2
      // Predicated region
      $region29: #{tpu_custom_call.1} parent=5 // pred_check
        %p202 = pneg %p201
      $region30: #{tpu_custom_call.1} parent=5 // pred_check_branch
        %204 = sbr.rel (%p202) target = $region32
      $region31: #{tpu_custom_call.1} parent=5 // pred_region
        // Predicated region
        $region33: #{tpu_custom_call.1} parent=31 // pred_check
          %p205 = pneg %p38
        $region34: #{tpu_custom_call.1} parent=31 // pred_check_branch
          %207 = sbr.rel (%p205) target = $region36
        $region35: #{tpu_custom_call.1} parent=31 // pred_region
          %s208 = sand.u32 %s28, 1
          %s209 = scalar_lea.sflag [#allocation3], %s208
          %s210 = sand.u32 %s28, 1
          %s211 = smul.addr %s210, 8
          %s212 = scalar_lea.vmem [#allocation2], %s211
          %s214 = ssub.s32 128, 128
          %215 = vsyncadd %s209, %s214
          %s216 = smul.addr %s18, 128
          %s217 = scalar_lea.hbm %s0, %s216
          %s219 = sshll.u32 %s212, 4
          %s220 = int_to_ptr.vmem [resolvable:$true] %s219
          %222 = dma.hbm_to_vmem [thread:$0]  %s217, 128, %s220, %s209
        $region36: #{tpu_custom_call.1} parent=31 // pred_fallthru
          _
      $region32: #{tpu_custom_call.1} parent=5 // pred_fallthru
        _
      %p223 = scmp.le.s32.totalorder 1, %s18
      %p224 = scmp.lt.s32.totalorder %s18, 3
      %p225 = pnand %p223, %p224
      %p226 = pneg %p225
      // Predicated region
      $region37: #{tpu_custom_call.1} parent=5 // pred_check
        _
      $region38: #{tpu_custom_call.1} parent=5 // pred_check_branch
        %228 = sbr.rel (%p225) target = $region40
      $region39: #{tpu_custom_call.1} parent=5 // pred_region
        %s229 = ssub.s32 %s18, 1
        %s230 = sand.u32 %s31, 1
        %s231 = scalar_lea.sflag [#allocation3], %s230
        %s232 = sand.u32 %s31, 1
        %s233 = smul.addr %s232, 8
        %s234 = scalar_lea.vmem [#allocation2], %s233
        // Predicated region
        $region41: #{tpu_custom_call.1} parent=39 // pred_check
          %p235 = pneg %p44
        $region42: #{tpu_custom_call.1} parent=39 // pred_check_branch
          %237 = sbr.rel (%p235) target = $region44
        $region43: #{tpu_custom_call.1} parent=39 // pred_region
          %238 = dma.done %s231, 128
        $region44: #{tpu_custom_call.1} parent=39 // pred_fallthru
          _
        // Predicated region
        $region45: #{tpu_custom_call.1} parent=39 // pred_check
          %p239 = pneg %p65
        $region46: #{tpu_custom_call.1} parent=39 // pred_check_branch
          %241 = sbr.rel (%p239) target = $region48
        $region47: #{tpu_custom_call.1} parent=39 // pred_region
          %242 = dma.done [#allocation6], 2048
        $region48: #{tpu_custom_call.1} parent=39 // pred_fallthru
          _
        // Predicated region
        $region49: #{tpu_custom_call.1} parent=39 // pred_check
          %p243 = pneg %p107
        $region50: #{tpu_custom_call.1} parent=39 // pred_check_branch
          %245 = sbr.rel (%p243) target = $region52
        $region51: #{tpu_custom_call.1} parent=39 // pred_region
          %246 = dma.done [#allocation6], 2048
        $region52: #{tpu_custom_call.1} parent=39 // pred_fallthru
          _
        %s247 = sand.u32 %s31, 1
        %s248 = scalar_lea.sflag [#allocation3], %s247
        %s249 = sand.u32 %s31, 1
        %s250 = smul.addr %s249, 8
        %s251 = scalar_lea.vmem [#allocation2], %s250
        %p252 = pneg %p44
        %p253 = pneg %p41
        %p254 = pneg %p65
        %p255 = pneg %p62
        %p256 = pneg %p86
        %p257 = pneg %p83
        %p258 = pneg %p107
        %p259 = pneg %p104
        %p260 = pneg %p128
        %p261 = pneg %p125
        %p262 = pneg %p154
        %p263 = pneg %p151
        %s264 = sand.u32 %s141, 1
        %s265 = scalar_lea.sflag [#allocation4], %s264
        %s266 = sand.u32 %s141, 1
        %s267 = smul.addr %s266, 8
        %s268 = scalar_lea.vmem [#allocation8], %s267
        %v270 = vld [vmem:[%s234] sm:$0xff]
        %v271 = vpack.c.bf16 %v270, %v270
        %v272 = vld [vmem:[#allocation5] sm:$0xf]
        %v273 = vld [vmem:[#allocation5 + $0x4] sm:$0xf]
        %v274 = vld [vmem:[#allocation5 + $0x8] sm:$0xf]
        %v275 = vld [vmem:[#allocation5 + $0xc] sm:$0xf]
        %v276 = vld [vmem:[#allocation5 + $0x10] sm:$0xf]
        %v277 = vld [vmem:[#allocation5 + $0x14] sm:$0xf]
        %v278 = vld [vmem:[#allocation5 + $0x18] sm:$0xf]
        %v279 = vld [vmem:[#allocation5 + $0x1c] sm:$0xf]
        %v280 = vld [vmem:[#allocation5 + $0x20] sm:$0xf]
        %v281 = vld [vmem:[#allocation5 + $0x24] sm:$0xf]
        %v282 = vld [vmem:[#allocation5 + $0x28] sm:$0xf]
        %v283 = vld [vmem:[#allocation5 + $0x2c] sm:$0xf]
        %v284 = vld [vmem:[#allocation5 + $0x30] sm:$0xf]
        %v285 = vld [vmem:[#allocation5 + $0x34] sm:$0xf]
        %v286 = vld [vmem:[#allocation5 + $0x38] sm:$0xf]
        %v287 = vld [vmem:[#allocation5 + $0x3c] sm:$0xf]
        %v288 = vld [vmem:[%s2] sm:$0x1]
        %v290 = vlaneseq
        %v291 = vshrl.u32 %v290, 7
        %v292 = vsub.s32 0, %v291
        %v293 = vrot.slane %v288, %v292
        %v311 = vunpack.c.l.b16 %v272
        %v312 = vunpack.c.l.b16 %v273
        %v313 = vunpack.c.l.b16 %v274
        %v314 = vunpack.c.l.b16 %v275
        %v315 = vunpack.c.l.b16 %v276
        %v316 = vunpack.c.l.b16 %v277
        %v317 = vunpack.c.l.b16 %v278
        %v318 = vunpack.c.l.b16 %v279
        %v319 = vunpack.c.l.b16 %v280
        %v320 = vunpack.c.l.b16 %v281
        %v321 = vunpack.c.l.b16 %v282
        %v322 = vunpack.c.l.b16 %v283
        %v323 = vunpack.c.l.b16 %v284
        %v324 = vunpack.c.l.b16 %v285
        %v325 = vunpack.c.l.b16 %v286
        %v326 = vunpack.c.l.b16 %v287
        %v327 = vpack.c.b16 %v312, %v311
        %v328 = vpack.c.b16 %v314, %v313
        %v329 = vpack.c.b16 %v316, %v315
        %v330 = vpack.c.b16 %v318, %v317
        %v331 = vpack.c.b16 %v320, %v319
        %v332 = vpack.c.b16 %v322, %v321
        %v333 = vpack.c.b16 %v324, %v323
        %v334 = vpack.c.b16 %v326, %v325
        %343 = vmatprep.subr.bf16.mxu0 0
        %344 = vmatpush1.bf16.xpose.msra.mxu0 %v327
        %345 = vmatprep.subr.bf16.mxu0 0
        %346 = vmatpush1.bf16.xpose.msra.mxu0 %v328
        %347 = vmatprep.subr.bf16.mxu0 0
        %348 = vmatpush1.bf16.xpose.msra.mxu0 %v329
        %349 = vmatprep.subr.bf16.mxu0 0
        %350 = vmatpush1.bf16.xpose.msra.mxu0 %v330
        %351 = vmatprep.subr.bf16.mxu0 0
        %352 = vmatpush1.bf16.xpose.msra.mxu0 %v331
        %353 = vmatprep.subr.bf16.mxu0 0
        %354 = vmatpush1.bf16.xpose.msra.mxu0 %v332
        %355 = vmatprep.subr.bf16.mxu0 0
        %356 = vmatpush1.bf16.xpose.msra.mxu0 %v333
        %357 = vmatprep.subr.bf16.mxu0 0
        %358 = vmatpush1.bf16.xpose.msra.mxu0 %v334
        %359 = vmatprep.subr.bf16.mxu0 0
        %360 = vmatpush1.bf16.xpose.msra.mxu0 0
        %361 = vmatprep.subr.bf16.mxu0 0
        %362 = vmatpush1.bf16.xpose.msra.mxu0 0
        %363 = vmatprep.subr.bf16.mxu0 0
        %364 = vmatpush1.bf16.xpose.msra.mxu0 0
        %365 = vmatprep.subr.bf16.mxu0 0
        %366 = vmatpush1.bf16.xpose.msra.mxu0 0
        %367 = vmatprep.subr.bf16.mxu0 0
        %368 = vmatpush1.bf16.xpose.msra.mxu0 0
        %369 = vmatprep.subr.bf16.mxu0 0
        %370 = vmatpush1.bf16.xpose.msra.mxu0 0
        %371 = vmatprep.subr.bf16.mxu0 0
        %372 = vmatpush1.bf16.xpose.msra.mxu0 0
        %373 = vmatprep.subr.bf16.mxu0 0
        %374 = vmatpush1.bf16.xpose.msra.mxu0 0
        %375 = vmatprep.mubr.bf16.mxu0 0
        %376 = vmatmul.mubr.bf16.gmra.mrb[0].mxu0 %v271
        %v377 = vpop.f32.mrb[0].mxu0
        %v378 = vadd.f32 %v293, %v377
        %v379 = vpop.f32.mrb[0].mxu0
        %v380 = vpop.f32.mrb[0].mxu0
        %v381 = vpop.f32.mrb[0].mxu0
        %382 = vdwg.mxu0
        %v383 = vmax.f32 %v378, 0.0
        %v384 = vld [vmem:[#allocation7] sm:$0xf]
        %v385 = vld [vmem:[#allocation7 + $0x4] sm:$0xf]
        %v386 = vld [vmem:[#allocation7 + $0x8] sm:$0xf]
        %v387 = vld [vmem:[#allocation7 + $0xc] sm:$0xf]
        %v388 = vld [vmem:[#allocation7 + $0x10] sm:$0xf]
        %v389 = vld [vmem:[#allocation7 + $0x14] sm:$0xf]
        %v390 = vld [vmem:[#allocation7 + $0x18] sm:$0xf]
        %v391 = vld [vmem:[#allocation7 + $0x1c] sm:$0xf]
        %v392 = vld [vmem:[#allocation7 + $0x20] sm:$0xf]
        %v393 = vld [vmem:[#allocation7 + $0x24] sm:$0xf]
        %v394 = vld [vmem:[#allocation7 + $0x28] sm:$0xf]
        %v395 = vld [vmem:[#allocation7 + $0x2c] sm:$0xf]
        %v396 = vld [vmem:[#allocation7 + $0x30] sm:$0xf]
        %v397 = vld [vmem:[#allocation7 + $0x34] sm:$0xf]
        %v398 = vld [vmem:[#allocation7 + $0x38] sm:$0xf]
        %v399 = vld [vmem:[#allocation7 + $0x3c] sm:$0xf]
        %v400 = vld [vmem:[%s4] sm:$0x1]
        %v402 = vlaneseq
        %v403 = vshrl.u32 %v402, 7
        %v404 = vsub.s32 0, %v403
        %v405 = vrot.slane %v400, %v404
        %v423 = vunpack.c.l.b16 %v384
        %v424 = vunpack.c.l.b16 %v385
        %v425 = vunpack.c.l.b16 %v386
        %v426 = vunpack.c.l.b16 %v387
        %v427 = vunpack.c.l.b16 %v388
        %v428 = vunpack.c.l.b16 %v389
        %v429 = vunpack.c.l.b16 %v390
        %v430 = vunpack.c.l.b16 %v391
        %v431 = vunpack.c.l.b16 %v392
        %v432 = vunpack.c.l.b16 %v393
        %v433 = vunpack.c.l.b16 %v394
        %v434 = vunpack.c.l.b16 %v395
        %v435 = vunpack.c.l.b16 %v396
        %v436 = vunpack.c.l.b16 %v397
        %v437 = vunpack.c.l.b16 %v398
        %v438 = vunpack.c.l.b16 %v399
        %v439 = vpack.c.b16 %v424, %v423
        %v440 = vpack.c.b16 %v426, %v425
        %v441 = vpack.c.b16 %v428, %v427
        %v442 = vpack.c.b16 %v430, %v429
        %v443 = vpack.c.b16 %v432, %v431
        %v444 = vpack.c.b16 %v434, %v433
        %v445 = vpack.c.b16 %v436, %v435
        %v446 = vpack.c.b16 %v438, %v437
        %455 = vmatprep.subr.bf16.mxu0 0
        %456 = vmatpush1.bf16.xpose.msra.mxu0 %v439
        %457 = vmatprep.subr.bf16.mxu0 0
        %458 = vmatpush1.bf16.xpose.msra.mxu0 %v440
        %459 = vmatprep.subr.bf16.mxu0 0
        %460 = vmatpush1.bf16.xpose.msra.mxu0 %v441
        %461 = vmatprep.subr.bf16.mxu0 0
        %462 = vmatpush1.bf16.xpose.msra.mxu0 %v442
        %463 = vmatprep.subr.bf16.mxu0 0
        %464 = vmatpush1.bf16.xpose.msra.mxu0 %v443
        %465 = vmatprep.subr.bf16.mxu0 0
        %466 = vmatpush1.bf16.xpose.msra.mxu0 %v444
        %467 = vmatprep.subr.bf16.mxu0 0
        %468 = vmatpush1.bf16.xpose.msra.mxu0 %v445
        %469 = vmatprep.subr.bf16.mxu0 0
        %470 = vmatpush1.bf16.xpose.msra.mxu0 %v446
        %471 = vmatprep.subr.bf16.mxu0 0
        %472 = vmatpush1.bf16.xpose.msra.mxu0 0
        %473 = vmatprep.subr.bf16.mxu0 0
        %474 = vmatpush1.bf16.xpose.msra.mxu0 0
        %475 = vmatprep.subr.bf16.mxu0 0
        %476 = vmatpush1.bf16.xpose.msra.mxu0 0
        %477 = vmatprep.subr.bf16.mxu0 0
        %478 = vmatpush1.bf16.xpose.msra.mxu0 0
        %479 = vmatprep.subr.bf16.mxu0 0
        %480 = vmatpush1.bf16.xpose.msra.mxu0 0
        %481 = vmatprep.subr.bf16.mxu0 0
        %482 = vmatpush1.bf16.xpose.msra.mxu0 0
        %483 = vmatprep.subr.bf16.mxu0 0
        %484 = vmatpush1.bf16.xpose.msra.mxu0 0
        %485 = vmatprep.subr.bf16.mxu0 0
        %486 = vmatpush1.bf16.xpose.msra.mxu0 0
        %487 = vmatprep.mubr.bf16.mxu0 0
        %488 = vmatmul.mubr.bf16.gmra.mrb[0].mxu0 %v271
        %v489 = vpop.f32.mrb[0].mxu0
        %v490 = vadd.f32 %v405, %v489
        %v491 = vpop.f32.mrb[0].mxu0
        %v492 = vpop.f32.mrb[0].mxu0
        %v493 = vpop.f32.mrb[0].mxu0
        %494 = vdwg.mxu0
        %v495 = vxor.u32 %v490, 2147483648
        %v496 = vmul.f32 %v495, 1.442695
        %v497 = vpow.pop %v496
        %v498 = vadd.f32 %v497, 1.0
        %v499 = vrcp.pop %v498
        %v500 = vmul.f32 1.0, %v499
        %v501 = vsub.f32 %v383, %v270
        %v502 = vmul.f32 %v500, %v501
        %v503 = vadd.f32 %v270, %v502
        %v504 = vpack.c.bf16 %v503, %v503
        %s505 = scalar_lea.vmem [#allocation5], 64
        %v506 = vld [vmem:[%s505] sm:$0xf]
        %v507 = vld [vmem:[%s505 + $0x4] sm:$0xf]
        %v508 = vld [vmem:[%s505 + $0x8] sm:$0xf]
        %v509 = vld [vmem:[%s505 + $0xc] sm:$0xf]
        %v510 = vld [vmem:[%s505 + $0x10] sm:$0xf]
        %v511 = vld [vmem:[%s505 + $0x14] sm:$0xf]
        %v512 = vld [vmem:[%s505 + $0x18] sm:$0xf]
        %v513 = vld [vmem:[%s505 + $0x1c] sm:$0xf]
        %v514 = vld [vmem:[%s505 + $0x20] sm:$0xf]
        %v515 = vld [vmem:[%s505 + $0x24] sm:$0xf]
        %v516 = vld [vmem:[%s505 + $0x28] sm:$0xf]
        %v517 = vld [vmem:[%s505 + $0x2c] sm:$0xf]
        %v518 = vld [vmem:[%s505 + $0x30] sm:$0xf]
        %v519 = vld [vmem:[%s505 + $0x34] sm:$0xf]
        %v520 = vld [vmem:[%s505 + $0x38] sm:$0xf]
        %v521 = vld [vmem:[%s505 + $0x3c] sm:$0xf]
        %s522 = scalar_lea.vmem %s2, 1
        %v523 = vld [vmem:[%s522] sm:$0x1]
        %v525 = vlaneseq
        %v526 = vshrl.u32 %v525, 7
        %v527 = vsub.s32 0, %v526
        %v528 = vrot.slane %v523, %v527
        %v546 = vunpack.c.l.b16 %v506
        %v547 = vunpack.c.l.b16 %v507
        %v548 = vunpack.c.l.b16 %v508
        %v549 = vunpack.c.l.b16 %v509
        %v550 = vunpack.c.l.b16 %v510
        %v551 = vunpack.c.l.b16 %v511
        %v552 = vunpack.c.l.b16 %v512
        %v553 = vunpack.c.l.b16 %v513
        %v554 = vunpack.c.l.b16 %v514
        %v555 = vunpack.c.l.b16 %v515
        %v556 = vunpack.c.l.b16 %v516
        %v557 = vunpack.c.l.b16 %v517
        %v558 = vunpack.c.l.b16 %v518
        %v559 = vunpack.c.l.b16 %v519
        %v560 = vunpack.c.l.b16 %v520
        %v561 = vunpack.c.l.b16 %v521
        %v562 = vpack.c.b16 %v547, %v546
        %v563 = vpack.c.b16 %v549, %v548
        %v564 = vpack.c.b16 %v551, %v550
        %v565 = vpack.c.b16 %v553, %v552
        %v566 = vpack.c.b16 %v555, %v554
        %v567 = vpack.c.b16 %v557, %v556
        %v568 = vpack.c.b16 %v559, %v558
        %v569 = vpack.c.b16 %v561, %v560
        %578 = vmatprep.subr.bf16.mxu0 0
        %579 = vmatpush1.bf16.xpose.msra.mxu0 %v562
        %580 = vmatprep.subr.bf16.mxu0 0
        %581 = vmatpush1.bf16.xpose.msra.mxu0 %v563
        %582 = vmatprep.subr.bf16.mxu0 0
        %583 = vmatpush1.bf16.xpose.msra.mxu0 %v564
        %584 = vmatprep.subr.bf16.mxu0 0
        %585 = vmatpush1.bf16.xpose.msra.mxu0 %v565
        %586 = vmatprep.subr.bf16.mxu0 0
        %587 = vmatpush1.bf16.xpose.msra.mxu0 %v566
        %588 = vmatprep.subr.bf16.mxu0 0
        %589 = vmatpush1.bf16.xpose.msra.mxu0 %v567
        %590 = vmatprep.subr.bf16.mxu0 0
        %591 = vmatpush1.bf16.xpose.msra.mxu0 %v568
        %592 = vmatprep.subr.bf16.mxu0 0
        %593 = vmatpush1.bf16.xpose.msra.mxu0 %v569
        %594 = vmatprep.subr.bf16.mxu0 0
        %595 = vmatpush1.bf16.xpose.msra.mxu0 0
        %596 = vmatprep.subr.bf16.mxu0 0
        %597 = vmatpush1.bf16.xpose.msra.mxu0 0
        %598 = vmatprep.subr.bf16.mxu0 0
        %599 = vmatpush1.bf16.xpose.msra.mxu0 0
        %600 = vmatprep.subr.bf16.mxu0 0
        %601 = vmatpush1.bf16.xpose.msra.mxu0 0
        %602 = vmatprep.subr.bf16.mxu0 0
        %603 = vmatpush1.bf16.xpose.msra.mxu0 0
        %604 = vmatprep.subr.bf16.mxu0 0
        %605 = vmatpush1.bf16.xpose.msra.mxu0 0
        %606 = vmatprep.subr.bf16.mxu0 0
        %607 = vmatpush1.bf16.xpose.msra.mxu0 0
        %608 = vmatprep.subr.bf16.mxu0 0
        %609 = vmatpush1.bf16.xpose.msra.mxu0 0
        %610 = vmatprep.mubr.bf16.mxu0 0
        %611 = vmatmul.mubr.bf16.gmra.mrb[0].mxu0 %v504
        %v612 = vpop.f32.mrb[0].mxu0
        %v613 = vadd.f32 %v528, %v612
        %v614 = vpop.f32.mrb[0].mxu0
        %v615 = vpop.f32.mrb[0].mxu0
        %v616 = vpop.f32.mrb[0].mxu0
        %617 = vdwg.mxu0
        %v618 = vmax.f32 %v613, 0.0
        %s619 = scalar_lea.vmem [#allocation7], 64
        %v620 = vld [vmem:[%s619] sm:$0xf]
        %v621 = vld [vmem:[%s619 + $0x4] sm:$0xf]
        %v622 = vld [vmem:[%s619 + $0x8] sm:$0xf]
        %v623 = vld [vmem:[%s619 + $0xc] sm:$0xf]
        %v624 = vld [vmem:[%s619 + $0x10] sm:$0xf]
        %v625 = vld [vmem:[%s619 + $0x14] sm:$0xf]
        %v626 = vld [vmem:[%s619 + $0x18] sm:$0xf]
        %v627 = vld [vmem:[%s619 + $0x1c] sm:$0xf]
        %v628 = vld [vmem:[%s619 + $0x20] sm:$0xf]
        %v629 = vld [vmem:[%s619 + $0x24] sm:$0xf]
        %v630 = vld [vmem:[%s619 + $0x28] sm:$0xf]
        %v631 = vld [vmem:[%s619 + $0x2c] sm:$0xf]
        %v632 = vld [vmem:[%s619 + $0x30] sm:$0xf]
        %v633 = vld [vmem:[%s619 + $0x34] sm:$0xf]
        %v634 = vld [vmem:[%s619 + $0x38] sm:$0xf]
        %v635 = vld [vmem:[%s619 + $0x3c] sm:$0xf]
        %s636 = scalar_lea.vmem %s4, 1
        %v637 = vld [vmem:[%s636] sm:$0x1]
        %v639 = vlaneseq
        %v640 = vshrl.u32 %v639, 7
        %v641 = vsub.s32 0, %v640
        %v642 = vrot.slane %v637, %v641
        %v660 = vunpack.c.l.b16 %v620
        %v661 = vunpack.c.l.b16 %v621
        %v662 = vunpack.c.l.b16 %v622
        %v663 = vunpack.c.l.b16 %v623
        %v664 = vunpack.c.l.b16 %v624
        %v665 = vunpack.c.l.b16 %v625
        %v666 = vunpack.c.l.b16 %v626
        %v667 = vunpack.c.l.b16 %v627
        %v668 = vunpack.c.l.b16 %v628
        %v669 = vunpack.c.l.b16 %v629
        %v670 = vunpack.c.l.b16 %v630
        %v671 = vunpack.c.l.b16 %v631
        %v672 = vunpack.c.l.b16 %v632
        %v673 = vunpack.c.l.b16 %v633
        %v674 = vunpack.c.l.b16 %v634
        %v675 = vunpack.c.l.b16 %v635
        %v676 = vpack.c.b16 %v661, %v660
        %v677 = vpack.c.b16 %v663, %v662
        %v678 = vpack.c.b16 %v665, %v664
        %v679 = vpack.c.b16 %v667, %v666
        %v680 = vpack.c.b16 %v669, %v668
        %v681 = vpack.c.b16 %v671, %v670
        %v682 = vpack.c.b16 %v673, %v672
        %v683 = vpack.c.b16 %v675, %v674
        %692 = vmatprep.subr.bf16.mxu0 0
        %693 = vmatpush1.bf16.xpose.msra.mxu0 %v676
        %694 = vmatprep.subr.bf16.mxu0 0
        %695 = vmatpush1.bf16.xpose.msra.mxu0 %v677
        %696 = vmatprep.subr.bf16.mxu0 0
        %697 = vmatpush1.bf16.xpose.msra.mxu0 %v678
        %698 = vmatprep.subr.bf16.mxu0 0
        %699 = vmatpush1.bf16.xpose.msra.mxu0 %v679
        %700 = vmatprep.subr.bf16.mxu0 0
        %701 = vmatpush1.bf16.xpose.msra.mxu0 %v680
        %702 = vmatprep.subr.bf16.mxu0 0
        %703 = vmatpush1.bf16.xpose.msra.mxu0 %v681
        %704 = vmatprep.subr.bf16.mxu0 0
        %705 = vmatpush1.bf16.xpose.msra.mxu0 %v682
        %706 = vmatprep.subr.bf16.mxu0 0
        %707 = vmatpush1.bf16.xpose.msra.mxu0 %v683
        %708 = vmatprep.subr.bf16.mxu0 0
        %709 = vmatpush1.bf16.xpose.msra.mxu0 0
        %710 = vmatprep.subr.bf16.mxu0 0
        %711 = vmatpush1.bf16.xpose.msra.mxu0 0
        %712 = vmatprep.subr.bf16.mxu0 0
        %713 = vmatpush1.bf16.xpose.msra.mxu0 0
        %714 = vmatprep.subr.bf16.mxu0 0
        %715 = vmatpush1.bf16.xpose.msra.mxu0 0
        %716 = vmatprep.subr.bf16.mxu0 0
        %717 = vmatpush1.bf16.xpose.msra.mxu0 0
        %718 = vmatprep.subr.bf16.mxu0 0
        %719 = vmatpush1.bf16.xpose.msra.mxu0 0
        %720 = vmatprep.subr.bf16.mxu0 0
        %721 = vmatpush1.bf16.xpose.msra.mxu0 0
        %722 = vmatprep.subr.bf16.mxu0 0
        %723 = vmatpush1.bf16.xpose.msra.mxu0 0
        %724 = vmatprep.mubr.bf16.mxu0 0
        %725 = vmatmul.mubr.bf16.gmra.mrb[0].mxu0 %v504
        %v726 = vpop.f32.mrb[0].mxu0
        %v727 = vadd.f32 %v642, %v726
        %v728 = vpop.f32.mrb[0].mxu0
        %v729 = vpop.f32.mrb[0].mxu0
        %v730 = vpop.f32.mrb[0].mxu0
        %731 = vdwg.mxu0
        %v732 = vxor.u32 %v727, 2147483648
        %v733 = vmul.f32 %v732, 1.442695
        %v734 = vpow.pop %v733
        %v735 = vadd.f32 %v734, 1.0
        %v736 = vrcp.pop %v735
        %v737 = vmul.f32 1.0, %v736
        %v738 = vsub.f32 %v618, %v503
        %v739 = vmul.f32 %v737, %v738
        %v740 = vadd.f32 %v503, %v739
        %741 = vst [vmem:[%s268] sm:$0xff] %v740
        %s742 = sand.u32 %s141, 1
        %s743 = scalar_lea.sflag [#allocation4], %s742
        %s744 = sand.u32 %s141, 1
        %s745 = smul.addr %s744, 8
        %s746 = scalar_lea.vmem [#allocation8], %s745
        // Predicated region
        $region53: #{tpu_custom_call.1} parent=39 // pred_check
          %p747 = pneg %p151
        $region54: #{tpu_custom_call.1} parent=39 // pred_check_branch
          %749 = sbr.rel (%p747) target = $region56
        $region55: #{tpu_custom_call.1} parent=39 // pred_region
          %s751 = ssub.s32 128, 128
          %752 = vsyncadd %s743, %s751
          %s753 = smul.addr %s23, 128
          %s754 = scalar_lea.hbm %s5, %s753
          %s756 = sshll.u32 %s746, 4
          %s757 = int_to_ptr.vmem [resolvable:$true] %s756
          %759 = dma.vmem_to_hbm [thread:$0]  %s757, 128, %s754, %s743
        $region56: #{tpu_custom_call.1} parent=39 // pred_fallthru
          _
      $region40: #{tpu_custom_call.1} parent=5 // pred_fallthru
        _
      %p760 = scmp.le.s32.totalorder 2, %s18
      // Predicated region
      $region57: #{tpu_custom_call.1} parent=5 // pred_check
        %p761 = pneg %p760
      $region58: #{tpu_custom_call.1} parent=5 // pred_check_branch
        %763 = sbr.rel (%p761) target = $region60
      $region59: #{tpu_custom_call.1} parent=5 // pred_region
        %s764 = ssub.s32 %s18, 2
        // Predicated region
        $region61: #{tpu_custom_call.1} parent=59 // pred_check
          %p765 = pneg %p157
        $region62: #{tpu_custom_call.1} parent=59 // pred_check_branch
          %767 = sbr.rel (%p765) target = $region64
        $region63: #{tpu_custom_call.1} parent=59 // pred_region
          %s768 = sand.u32 %s142, 1
          %s769 = scalar_lea.sflag [#allocation4], %s768
          %s770 = sand.u32 %s142, 1
          %s771 = smul.addr %s770, 8
          %s772 = scalar_lea.vmem [#allocation8], %s771
          %773 = dma.done %s769, 128
        $region64: #{tpu_custom_call.1} parent=59 // pred_fallthru
          _
      $region60: #{tpu_custom_call.1} parent=5 // pred_fallthru
        _
    $region6: #{tpu_custom_call.1} parent=1 // loop_footer
      %s22 = sadd.s32 1, %s18
    $region7: #{tpu_custom_call.1} parent=1 // loop_footer_branch
      %17 = sbr.rel target = $region3
    $region8: #{tpu_custom_call.1} parent=1 // loop_exit
      _
    %774 = vsyncpa [#allocation3], 1
    %s775 = scalar_lea.sflag [#allocation3], 1
    %776 = vsyncpa %s775, 1
    %777 = vsyncpa [#allocation6], 1
    %778 = vsyncpa [#allocation4], 1
    %s779 = scalar_lea.sflag [#allocation4], 1
    %780 = vsyncpa %s779, 1

</llo_original>
